<compile_context>
chip_gen: v5e
topology: v5e:2x2
jax: 0.10.0
libtpu: 0.0.40
codegen_flags: <defaults>
</compile_context>

<pallas_src>
import jax
import jax.numpy as jnp
from jax.experimental import pallas as pl
from jax.experimental.pallas import tpu as pltpu

# Set to jnp.bfloat16 on v6e/v7x for ~2x MXU throughput (accumulation stays f32
# via preferred_element_type); kept f32 here to match the PyTorch module closely.
MATMUL_INPUT_DTYPE = jnp.float32


def convblock_kernel(x_ref, w_ref, o_ref, p_ref):
    # x_ref: (1, H+2, W+2, Cin)  reflection-padded NHWC input (one batch element)
    # w_ref: (Cout, 9*Cin)       weights, column index = (kh*3+kw)*Cin + cin
    # o_ref: (1, Cout, H*W)      lane-dense NCHW(-flattened) output
    # p_ref: (H*W, 9*Cin)        VMEM im2col scratch
    Cin = x_ref.shape[3]
    Hp, Wp = x_ref.shape[1], x_ref.shape[2]
    H, W = Hp - 2, Wp - 2
    HW = H * W

    x = x_ref[0]  # (H+2, W+2, Cin)

    # Build the im2col buffer once: 9 shifted taps -> (H*W, 9*Cin).
    for kh in range(3):
        for kw in range(3):
            t = kh * 3 + kw
            p_ref[:, t * Cin:(t + 1) * Cin] = (
                x[kh:kh + H, kw:kw + W, :].reshape(HW, Cin).astype(p_ref.dtype))

    # Single MXU matmul with K = 9*Cin, f32 accumulation.
    # NT form: (Cout, 9Cin) . (HW, 9Cin)^T -> (Cout, HW)  (lane-dense result).
    acc = jax.lax.dot_general(
        w_ref[...], p_ref[...],
        dimension_numbers=(((1,), (1,)), ((), ())),
        preferred_element_type=jnp.float32)

    # InstanceNorm2d (affine=False, biased variance, eps=1e-5), per channel over
    # H*W (lane axis). Conv bias omitted: it cancels exactly against the mean.
    mean = jnp.mean(acc, axis=1, keepdims=True)                  # (Cout, 1)
    centered = acc - mean
    var = jnp.mean(centered * centered, axis=1, keepdims=True)   # (Cout, 1)
    y = centered * jax.lax.rsqrt(var + 1e-5)

    # LeakyReLU(0.2)
    y = jnp.where(y > 0, y, 0.2 * y)

    o_ref[0] = y.astype(o_ref.dtype)


@jax.jit
def conv_block(x, weight, bias):
    """x: (N, Cin, H, W) NCHW; weight: (Cout, Cin, 3, 3); bias: (Cout,).

    bias is accepted for API parity but unused: a per-channel conv bias cancels
    exactly under InstanceNorm2d(affine=False)."""
    del bias
    N, C_in, H, W = x.shape
    C_out = weight.shape[0]
    HW = H * W

    # ReflectionPad2d(1) + NCHW->NHWC; under jit these fuse into one HBM pass.
    xt = jnp.transpose(x, (0, 2, 3, 1))                             # (N, H, W, Cin)
    xp = jnp.pad(xt, ((0, 0), (1, 1), (1, 1), (0, 0)), mode="reflect")

    # Weight as (Cout, 9*Cin), column index = (kh*3+kw)*Cin + cin (matches kernel).
    w2 = jnp.transpose(weight, (0, 2, 3, 1)).reshape(C_out, 9 * C_in)
    w2 = w2.astype(MATMUL_INPUT_DTYPE)

    # Rough VMEM budget: double-buffered in/out blocks + weights + im2col + acc,
    # clamped so the limit stays safe on v7x's smaller physical VMEM.
    itm = x.dtype.itemsize
    in_blk = (H + 2) * (W + 2) * C_in * itm
    out_blk = C_out * HW * itm
    p_blk = HW * 9 * C_in * jnp.dtype(MATMUL_INPUT_DTYPE).itemsize
    est = 2 * (in_blk + out_blk) + 2 * w2.size * w2.dtype.itemsize + p_blk + C_out * HW * 4
    vmem_limit = int(min(max(2 * est, 32 * 1024 * 1024), 48 * 1024 * 1024))

    out_flat = pl.pallas_call(
        convblock_kernel,
        out_shape=jax.ShapeDtypeStruct((N, C_out, HW), x.dtype),
        grid=(N,),
        in_specs=[
            pl.BlockSpec((1, H + 2, W + 2, C_in), lambda n: (n, 0, 0, 0)),
            pl.BlockSpec((C_out, 9 * C_in), lambda n: (0, 0)),
        ],
        out_specs=pl.BlockSpec((1, C_out, HW), lambda n: (n, 0, 0)),
        scratch_shapes=[pltpu.VMEM((HW, 9 * C_in), MATMUL_INPUT_DTYPE)],
        compiler_params=pltpu.CompilerParams(
            dimension_semantics=("parallel",),
            vmem_limit_bytes=vmem_limit),
    )(xp, w2)

    # (N, Cout, H*W) -> (N, Cout, H, W): contiguous split, no data movement.
    return out_flat.reshape(N, C_out, H, W)


def _reference(x, weight, bias):
    """Pure-JAX reference of the same forward pass (bias included, as in the module)."""
    xp = jnp.pad(x, ((0, 0), (0, 0), (1, 1), (1, 1)), mode="reflect")
    y = jax.lax.conv_general_dilated(
        xp.astype(jnp.float32), weight.astype(jnp.float32),
        window_strides=(1, 1), padding="VALID",
        dimension_numbers=("NCHW", "OIHW", "NCHW"))
    y = y + bias.reshape(1, -1, 1, 1)
    mean = jnp.mean(y, axis=(2, 3), keepdims=True)
    var = jnp.mean((y - mean) ** 2, axis=(2, 3), keepdims=True)
    y = (y - mean) / jnp.sqrt(var + 1e-5)
    return jnp.where(y > 0, y, 0.2 * y).astype(x.dtype)


if __name__ == "__main__":
    key = jax.random.PRNGKey(0)
    k_x, k_w, k_b = jax.random.split(key, 3)

    N, C_in, C_out, H, W = 2, 4, 8, 16, 16

    x = jax.random.normal(k_x, (N, C_in, H, W), dtype=jnp.float32)
    # Deterministic synthetic params (Conv2d shapes: weight (Cout,Cin,3,3), bias (Cout,))
    fan_in = C_in * 3 * 3
    bound = 1.0 / (fan_in ** 0.5)
    weight = jax.random.uniform(k_w, (C_out, C_in, 3, 3),
                                minval=-bound, maxval=bound, dtype=jnp.float32)
    bias = jax.random.uniform(k_b, (C_out,),
                              minval=-bound, maxval=bound, dtype=jnp.float32)

    out = conv_block(x, weight, bias)
    out = jax.block_until_ready(out)

    ref = _reference(x, weight, bias)
    assert out.shape == (N, C_out, H, W)
    assert jnp.allclose(out, ref, atol=1e-4, rtol=1e-4)

    print("KERNEL_OK")
</pallas_src>

<mosaic_0001>
module attributes {stable_mosaic.version = 11 : i64} {
  func.func @convblock_kernel(%arg0: i32, %arg1: memref<1x18x18x4xf32, #tpu.memory_space<vmem>>, %arg2: memref<8x36xf32, #tpu.memory_space<vmem>>, %arg3: memref<1x8x256xf32, #tpu.memory_space<vmem>>, %arg4: memref<256x36xf32, #tpu.memory_space<vmem>>) attributes {dimension_semantics = [#tpu.dimension_semantics<parallel>], iteration_bounds = array<i64: 2>, scalar_prefetch = 0 : i64, scratch_operands = 1 : i64, tpu.core_type = #tpu.core_type<tc>, window_params = [{transform_indices = @transform_0, window_bounds = array<i64: 1, 18, 18, 4>}, {pipeline_mode = #tpu.pipeline_mode<synchronous>, transform_indices = @transform_1, window_bounds = array<i64: 8, 36>}, {transform_indices = @transform_2, window_bounds = array<i64: 1, 8, 256>}]} {
    %c0 = arith.constant 0 : index
    %c0_0 = arith.constant 0 : index
    %c0_1 = arith.constant 0 : index
    %c0_2 = arith.constant 0 : index
    %0 = vector.load %arg1[%c0, %c0_0, %c0_1, %c0_2] : memref<1x18x18x4xf32, #tpu.memory_space<vmem>>, vector<1x18x18x4xf32>
    %1 = vector.shape_cast %0 : vector<1x18x18x4xf32> to vector<18x18x4xf32>
    %2 = vector.extract_strided_slice %1 {offsets = [0, 0, 0], sizes = [16, 16, 4], strides = [1, 1, 1]} : vector<18x18x4xf32> to vector<16x16x4xf32>
    %3 = vector.shape_cast %2 : vector<16x16x4xf32> to vector<256x4xf32>
    %c0_3 = arith.constant 0 : index
    %c0_4 = arith.constant 0 : index
    %4 = vector.load %arg4[%c0_3, %c0_4] : memref<256x36xf32, #tpu.memory_space<vmem>>, vector<256x4xf32>
    tpu.vector_store %arg4[%c0_3, %c0_4], %3 {strides = array<i32>} : memref<256x36xf32, #tpu.memory_space<vmem>>, vector<256x4xf32>,
    %5 = vector.extract_strided_slice %1 {offsets = [0, 1, 0], sizes = [16, 16, 4], strides = [1, 1, 1]} : vector<18x18x4xf32> to vector<16x16x4xf32>
    %6 = vector.shape_cast %5 : vector<16x16x4xf32> to vector<256x4xf32>
    %c0_5 = arith.constant 0 : index
    %c4 = arith.constant 4 : index
    %7 = vector.load %arg4[%c0_5, %c4] : memref<256x36xf32, #tpu.memory_space<vmem>>, vector<256x4xf32>
    tpu.vector_store %arg4[%c0_5, %c4], %6 {strides = array<i32>} : memref<256x36xf32, #tpu.memory_space<vmem>>, vector<256x4xf32>,
    %8 = vector.extract_strided_slice %1 {offsets = [0, 2, 0], sizes = [16, 16, 4], strides = [1, 1, 1]} : vector<18x18x4xf32> to vector<16x16x4xf32>
    %9 = vector.shape_cast %8 : vector<16x16x4xf32> to vector<256x4xf32>
    %c0_6 = arith.constant 0 : index
    %c8 = arith.constant 8 : index
    %10 = vector.load %arg4[%c0_6, %c8] : memref<256x36xf32, #tpu.memory_space<vmem>>, vector<256x4xf32>
    tpu.vector_store %arg4[%c0_6, %c8], %9 {strides = array<i32>} : memref<256x36xf32, #tpu.memory_space<vmem>>, vector<256x4xf32>,
    %11 = vector.extract_strided_slice %1 {offsets = [1, 0, 0], sizes = [16, 16, 4], strides = [1, 1, 1]} : vector<18x18x4xf32> to vector<16x16x4xf32>
    %12 = vector.shape_cast %11 : vector<16x16x4xf32> to vector<256x4xf32>
    %c0_7 = arith.constant 0 : index
    %c12 = arith.constant 12 : index
    %13 = vector.load %arg4[%c0_7, %c12] : memref<256x36xf32, #tpu.memory_space<vmem>>, vector<256x4xf32>
    tpu.vector_store %arg4[%c0_7, %c12], %12 {strides = array<i32>} : memref<256x36xf32, #tpu.memory_space<vmem>>, vector<256x4xf32>,
    %14 = vector.extract_strided_slice %1 {offsets = [1, 1, 0], sizes = [16, 16, 4], strides = [1, 1, 1]} : vector<18x18x4xf32> to vector<16x16x4xf32>
    %15 = vector.shape_cast %14 : vector<16x16x4xf32> to vector<256x4xf32>
    %c0_8 = arith.constant 0 : index
    %c16 = arith.constant 16 : index
    %16 = vector.load %arg4[%c0_8, %c16] : memref<256x36xf32, #tpu.memory_space<vmem>>, vector<256x4xf32>
    tpu.vector_store %arg4[%c0_8, %c16], %15 {strides = array<i32>} : memref<256x36xf32, #tpu.memory_space<vmem>>, vector<256x4xf32>,
    %17 = vector.extract_strided_slice %1 {offsets = [1, 2, 0], sizes = [16, 16, 4], strides = [1, 1, 1]} : vector<18x18x4xf32> to vector<16x16x4xf32>
    %18 = vector.shape_cast %17 : vector<16x16x4xf32> to vector<256x4xf32>
    %c0_9 = arith.constant 0 : index
    %c20 = arith.constant 20 : index
    %19 = vector.load %arg4[%c0_9, %c20] : memref<256x36xf32, #tpu.memory_space<vmem>>, vector<256x4xf32>
    tpu.vector_store %arg4[%c0_9, %c20], %18 {strides = array<i32>} : memref<256x36xf32, #tpu.memory_space<vmem>>, vector<256x4xf32>,
    %20 = vector.extract_strided_slice %1 {offsets = [2, 0, 0], sizes = [16, 16, 4], strides = [1, 1, 1]} : vector<18x18x4xf32> to vector<16x16x4xf32>
    %21 = vector.shape_cast %20 : vector<16x16x4xf32> to vector<256x4xf32>
    %c0_10 = arith.constant 0 : index
    %c24 = arith.constant 24 : index
    %22 = vector.load %arg4[%c0_10, %c24] : memref<256x36xf32, #tpu.memory_space<vmem>>, vector<256x4xf32>
    tpu.vector_store %arg4[%c0_10, %c24], %21 {strides = array<i32>} : memref<256x36xf32, #tpu.memory_space<vmem>>, vector<256x4xf32>,
    %23 = vector.extract_strided_slice %1 {offsets = [2, 1, 0], sizes = [16, 16, 4], strides = [1, 1, 1]} : vector<18x18x4xf32> to vector<16x16x4xf32>
    %24 = vector.shape_cast %23 : vector<16x16x4xf32> to vector<256x4xf32>
    %c0_11 = arith.constant 0 : index
    %c28 = arith.constant 28 : index
    %25 = vector.load %arg4[%c0_11, %c28] : memref<256x36xf32, #tpu.memory_space<vmem>>, vector<256x4xf32>
    tpu.vector_store %arg4[%c0_11, %c28], %24 {strides = array<i32>} : memref<256x36xf32, #tpu.memory_space<vmem>>, vector<256x4xf32>,
    %26 = vector.extract_strided_slice %1 {offsets = [2, 2, 0], sizes = [16, 16, 4], strides = [1, 1, 1]} : vector<18x18x4xf32> to vector<16x16x4xf32>
    %27 = vector.shape_cast %26 : vector<16x16x4xf32> to vector<256x4xf32>
    %c0_12 = arith.constant 0 : index
    %c32 = arith.constant 32 : index
    %28 = vector.load %arg4[%c0_12, %c32] : memref<256x36xf32, #tpu.memory_space<vmem>>, vector<256x4xf32>
    tpu.vector_store %arg4[%c0_12, %c32], %27 {strides = array<i32>} : memref<256x36xf32, #tpu.memory_space<vmem>>, vector<256x4xf32>,
    %c0_13 = arith.constant 0 : index
    %c0_14 = arith.constant 0 : index
    %29 = vector.load %arg2[%c0_13, %c0_14] : memref<8x36xf32, #tpu.memory_space<vmem>>, vector<8x36xf32>
    %c0_15 = arith.constant 0 : index
    %c0_16 = arith.constant 0 : index
    %30 = vector.load %arg4[%c0_15, %c0_16] : memref<256x36xf32, #tpu.memory_space<vmem>>, vector<256x36xf32>
    %cst = arith.constant dense<0.000000e+00> : vector<8x256xf32>
    %31 = tpu.matmul %29, %30, %cst {dimension_numbers = #tpu.dot_dimension_numbers<[1], [1], [0], [0], [0, 0, 1, 0], [], []>} : vector<8x36xf32>, vector<256x36xf32>, vector<8x256xf32> -> vector<8x256xf32>
    %cst_17 = arith.constant dense<0.000000e+00> : vector<8xf32>
    %32 = vector.multi_reduction <add>, %31, %cst_17 [1] : vector<8x256xf32> to vector<8xf32>
    %33 = vector.shape_cast %32 : vector<8xf32> to vector<8x1xf32>
    %cst_18 = arith.constant 2.560000e+02 : f32
    %34 = vector.broadcast %cst_18 : f32 to vector<8x1xf32>
    %35 = arith.divf %33, %34 : vector<8x1xf32>
    %36 = vector.broadcast %35 : vector<8x1xf32> to vector<8x256xf32>
    %37 = arith.subf %31, %36 : vector<8x256xf32>
    %38 = arith.mulf %37, %37 : vector<8x256xf32>
    %cst_19 = arith.constant dense<0.000000e+00> : vector<8xf32>
    %39 = vector.multi_reduction <add>, %38, %cst_19 [1] : vector<8x256xf32> to vector<8xf32>
    %40 = vector.shape_cast %39 : vector<8xf32> to vector<8x1xf32>
    %cst_20 = arith.constant 2.560000e+02 : f32
    %41 = vector.broadcast %cst_20 : f32 to vector<8x1xf32>
    %42 = arith.divf %40, %41 : vector<8x1xf32>
    %cst_21 = arith.constant 9.99999974E-6 : f32
    %43 = vector.broadcast %cst_21 : f32 to vector<8x1xf32>
    %44 = arith.addf %42, %43 : vector<8x1xf32>
    %45 = math.rsqrt %44 : vector<8x1xf32>
    %46 = vector.broadcast %45 : vector<8x1xf32> to vector<8x256xf32>
    %47 = arith.mulf %37, %46 : vector<8x256xf32>
    %cst_22 = arith.constant 0.000000e+00 : f32
    %48 = vector.broadcast %cst_22 : f32 to vector<8x256xf32>
    %49 = arith.cmpf ogt, %47, %48 : vector<8x256xf32>
    %cst_23 = arith.constant 2.000000e-01 : f32
    %50 = vector.broadcast %cst_23 : f32 to vector<8x256xf32>
    %51 = arith.mulf %50, %47 : vector<8x256xf32>
    %52 = arith.select %49, %47, %51 : vector<8x256xi1>, vector<8x256xf32>
    %c0_24 = arith.constant 0 : index
    %c0_25 = arith.constant 0 : index
    %c0_26 = arith.constant 0 : index
    %53 = vector.load %arg3[%c0_24, %c0_25, %c0_26] : memref<1x8x256xf32, #tpu.memory_space<vmem>>, vector<1x8x256xf32>
    %54 = vector.shape_cast %53 : vector<1x8x256xf32> to vector<8x256xf32>
    %55 = vector.shape_cast %52 : vector<8x256xf32> to vector<1x8x256xf32>
    tpu.vector_store %arg3[%c0_24, %c0_25, %c0_26], %55 {strides = array<i32>} : memref<1x8x256xf32, #tpu.memory_space<vmem>>, vector<1x8x256xf32>,
    return
  }
  func.func @transform_0(%arg0: i32) -> (i32, i32, i32, i32) {
    %c0_i32 = arith.constant 0 : i32
    %c0_i32_0 = arith.constant 0 : i32
    %c0_i32_1 = arith.constant 0 : i32
    %c0_i32_2 = arith.constant 0 : i32
    return %arg0, %c0_i32, %c0_i32_0, %c0_i32_1 : i32, i32, i32, i32
  }
  func.func @transform_1(%arg0: i32) -> (i32, i32) {
    %c0_i32 = arith.constant 0 : i32
    %c0_i32_0 = arith.constant 0 : i32
    %c0_i32_1 = arith.constant 0 : i32
    return %c0_i32, %c0_i32_0 : i32, i32
  }
  func.func @transform_2(%arg0: i32) -> (i32, i32, i32) {
    %c0_i32 = arith.constant 0 : i32
    %c0_i32_0 = arith.constant 0 : i32
    %c0_i32_1 = arith.constant 0 : i32
    return %arg0, %c0_i32, %c0_i32_0 : i32, i32, i32
  }
}

</mosaic_0001>

<llo_original>
// kernel: conv_block.1
$region0: #{conv_block.1}
  #allocation0 [shape = 'u32[]', space=smem, size = 0x4, offset = 0x4, fixed_abs, tag = 'smem constant byte address 0x4 - core index']
  #allocation1 [shape = 'u32[72,128]{1,0:T(1,128)}', space=vmem, size = 0x9000, scoped, tag = 'internal scratch']
  #allocation2 [shape = 'f32[256,36]{1,0:T(8,128)}', space=vmem, size = 0x20000, scoped, tag = 'scratch operand']
  %s0 = inlined_call_operand.vmem [shape: f32[2,18,18,4], index: 0, kind: input, shape index: {}]
  %s1 = inlined_call_operand.vmem [shape: f32[8,36], index: 1, kind: input, shape index: {}]
  %s2 = inlined_call_operand.vmem [shape: f32[2,8,256], index: 2, kind: output, shape index: {}]
  %s3 = sld [smem:[#allocation0]]
  $region41: #{conv_block.1} parent=0
    _
  %s5 = ssub.s32 1, %s3
  %s6 = scalar_select 0, %s5, %s3
  loop: start=0, step=1, limit=4
  $region2: #{conv_block.1} parent=0 // loop_pre_header
    _
  $region3: #{conv_block.1} parent=0 // loop_header
    %s8 = sphi 0, %s12
    %p9 = scmp.ge.s32.totalorder %s8, 4
    %s18 = sphi 0, %s20
    %s21 = sphi 0, %s18
    %s22 = sphi 0, %s21
    %s38 = sphi 0, %s22
    %s42 = sphi 0, %s42
    %s44 = sphi 0, %s42
    %s45 = sphi 0, %s44
    %s59 = sphi 0, %s45
    %s65 = sphi 0, %s67
    %s68 = sphi 0, %s65
    %s69 = sphi 0, %s68
    %s85 = sphi 0, %s69
  $region4: #{conv_block.1} parent=0 // loop_header_branch
    %11 = sbr.rel (%p9) target = $region8
  $region5: #{conv_block.1} parent=0 // loop_body
    %s13 = ssub.s32 %s8, 1
    %s14 = ssub.s32 %s8, 2
    %s15 = sadd.s32 %s8, 1
    %s16 = ssub.s32 %s8, %s15
    %p17 = scmp.eq.s32.totalorder %s16, 0
    %s19 = sadd.s32 %s18, 1
    %s20 = scalar_select %p17, %s18, %s19
    %p23 = pneg %p17
    %p24 = scmp.eq.s32.totalorder %s8, 1
    %p25 = por %p23, %p24
    %p26 = scmp.ne.s32.totalorder %s18, %s21
    %p27 = scmp.eq.s32.totalorder %s8, 0
    %p28 = por %p26, %p27
    %p29 = scmp.ne.s32.totalorder %s18, %s21
    %p30 = scmp.eq.s32.totalorder %s13, 1
    %p31 = por %p29, %p30
    %p32 = scmp.ne.s32.totalorder %s21, %s22
    %p33 = scmp.eq.s32.totalorder %s13, 0
    %p34 = por %p32, %p33
    %p35 = scmp.ne.s32.totalorder %s21, %s22
    %p36 = scmp.eq.s32.totalorder %s14, 1
    %p37 = por %p35, %p36
    %p39 = scmp.ne.s32.totalorder %s22, %s38
    %p40 = scmp.eq.s32.totalorder %s14, 0
    %p41 = por %p39, %p40
    %s43 = sadd.s32 %s42, 1
    %p46 = scmp.eq.s32.totalorder %s8, 1
    %p47 = scmp.ne.s32.totalorder %s42, %s44
    %p48 = scmp.eq.s32.totalorder %s8, 0
    %p49 = por %p47, %p48
    %p50 = scmp.ne.s32.totalorder %s42, %s44
    %p51 = scmp.eq.s32.totalorder %s13, 1
    %p52 = por %p50, %p51
    %p53 = scmp.ne.s32.totalorder %s44, %s45
    %p54 = scmp.eq.s32.totalorder %s13, 0
    %p55 = por %p53, %p54
    %p56 = scmp.ne.s32.totalorder %s44, %s45
    %p57 = scmp.eq.s32.totalorder %s14, 1
    %p58 = por %p56, %p57
    %p60 = scmp.ne.s32.totalorder %s45, %s59
    %p61 = scmp.eq.s32.totalorder %s14, 0
    %p62 = por %p60, %p61
    %s63 = ssub.s32 %s8, %s15
    %p64 = scmp.eq.s32.totalorder %s63, 0
    %s66 = sadd.s32 %s65, 1
    %s67 = scalar_select %p64, %s65, %s66
    %p70 = pneg %p64
    %p71 = scmp.eq.s32.totalorder %s8, 1
    %p72 = por %p70, %p71
    %p73 = scmp.ne.s32.totalorder %s65, %s68
    %p74 = scmp.eq.s32.totalorder %s8, 0
    %p75 = por %p73, %p74
    %p76 = scmp.ne.s32.totalorder %s65, %s68
    %p77 = scmp.eq.s32.totalorder %s13, 1
    %p78 = por %p76, %p77
    %p79 = scmp.ne.s32.totalorder %s68, %s69
    %p80 = scmp.eq.s32.totalorder %s13, 0
    %p81 = por %p79, %p80
    %p82 = scmp.ne.s32.totalorder %s68, %s69
    %p83 = scmp.eq.s32.totalorder %s14, 1
    %p84 = por %p82, %p83
    %p86 = scmp.ne.s32.totalorder %s69, %s85
    %p87 = scmp.eq.s32.totalorder %s14, 0
    %p88 = por %p86, %p87
    %p89 = scmp.le.s32.totalorder 1, %s8
    %p90 = scmp.lt.s32.totalorder %s8, 3
    %p91 = pnand %p89, %p90
    %p92 = pneg %p91
    // Predicated region
    $region9: #{conv_block.1} parent=5 // pred_check
      _
    $region10: #{conv_block.1} parent=5 // pred_check_branch
      %94 = sbr.rel (%p91) target = $region12
    $region11: #{conv_block.1} parent=5 // pred_region
      %s95 = ssub.s32 %s8, 1
      // Predicated region
      $region13: #{conv_block.1} parent=11 // pred_check
        %p96 = pneg %p55
      $region14: #{conv_block.1} parent=11 // pred_check_branch
        %98 = sbr.rel (%p96) target = $region16
      $region15: #{conv_block.1} parent=11 // pred_region
        _
      $region16: #{conv_block.1} parent=11 // pred_fallthru
        _
    $region12: #{conv_block.1} parent=5 // pred_fallthru
      _
    %p99 = scmp.lt.s32.totalorder %s8, 2
    // Predicated region
    $region17: #{conv_block.1} parent=5 // pred_check
      %p100 = pneg %p99
    $region18: #{conv_block.1} parent=5 // pred_check_branch
      %102 = sbr.rel (%p100) target = $region20
    $region19: #{conv_block.1} parent=5 // pred_region
      // Predicated region
      $region21: #{conv_block.1} parent=19 // pred_check
        %p103 = pneg %p28
      $region22: #{conv_block.1} parent=19 // pred_check_branch
        %105 = sbr.rel (%p103) target = $region24
      $region23: #{conv_block.1} parent=19 // pred_region
        %p106 = scmp.lt.s32.totalorder %s8, 1
        %s107 = scalar_select %p106, %s8, 1
        %s108 = smul.addr %s107, 54
        %s109 = smul.addr %s108, 8
        %s110 = scalar_lea.vmem %s0, %s109
      $region24: #{conv_block.1} parent=19 // pred_fallthru
        _
    $region20: #{conv_block.1} parent=5 // pred_fallthru
      _
    %p111 = scmp.le.s32.totalorder 1, %s8
    %p112 = scmp.lt.s32.totalorder %s8, 3
    %p113 = pnand %p111, %p112
    %p114 = pneg %p113
    // Predicated region
    $region25: #{conv_block.1} parent=5 // pred_check
      _
    $region26: #{conv_block.1} parent=5 // pred_check_branch
      %116 = sbr.rel (%p113) target = $region28
    $region27: #{conv_block.1} parent=5 // pred_region
      %s117 = ssub.s32 %s8, 1
      %p118 = scmp.lt.s32.totalorder %s13, 1
      %s119 = scalar_select %p118, %s13, 1
      %s120 = smul.addr %s119, 54
      %s121 = smul.addr %s120, 8
      %s122 = scalar_lea.vmem %s0, %s121
      %p123 = pneg %p34
      %p124 = pneg %p31
      %p125 = pneg %p55
      %p126 = pneg %p52
      %p127 = pneg %p81
      %p128 = pneg %p78
      %p129 = scmp.lt.s32.totalorder %s13, 1
      %s130 = scalar_select %p129, %s13, 1
      %s131 = smul.addr %s130, 2
      %s132 = smul.addr %s131, 8
      %s133 = scalar_lea.vmem %s2, %s132
      %p134 = scmp.lt.s32.totalorder %s13, 1
      %s135 = scalar_select %p134, %s13, 1
      %s136 = smul.addr %s135, 54
      %s137 = smul.addr %s136, 8
      %s138 = scalar_lea.vmem %s0, %s137
      %p139 = scmp.lt.s32.totalorder %s13, 1
      %s140 = scalar_select %p139, %s13, 1
      %s141 = smul.addr %s140, 2
      %s142 = smul.addr %s141, 8
      %s143 = scalar_lea.vmem %s2, %s142
      %v144 = vld [vmem:[%s138] sm:$0xff]
      %v145 = vld [vmem:[%s138 + $0x8] sm:$0xff]
      %v146 = vld [vmem:[%s138 + $0x10] sm:$0x3]
      %v147 = vld [vmem:[%s138 + $0x18] sm:$0xff]
      %v148 = vld [vmem:[%s138 + $0x20] sm:$0xff]
      %v149 = vld [vmem:[%s138 + $0x28] sm:$0x3]
      %v150 = vld [vmem:[%s138 + $0x30] sm:$0xff]
      %v151 = vld [vmem:[%s138 + $0x38] sm:$0xff]
      %v152 = vld [vmem:[%s138 + $0x40] sm:$0x3]
      %v153 = vld [vmem:[%s138 + $0x48] sm:$0xff]
      %v154 = vld [vmem:[%s138 + $0x50] sm:$0xff]
      %v155 = vld [vmem:[%s138 + $0x58] sm:$0x3]
      %v156 = vld [vmem:[%s138 + $0x60] sm:$0xff]
      %v157 = vld [vmem:[%s138 + $0x68] sm:$0xff]
      %v158 = vld [vmem:[%s138 + $0x70] sm:$0x3]
      %v159 = vld [vmem:[%s138 + $0x78] sm:$0xff]
      %v160 = vld [vmem:[%s138 + $0x80] sm:$0xff]
      %v161 = vld [vmem:[%s138 + $0x88] sm:$0x3]
      %v162 = vld [vmem:[%s138 + $0x90] sm:$0xff]
      %v163 = vld [vmem:[%s138 + $0x98] sm:$0xff]
      %v164 = vld [vmem:[%s138 + $0xa0] sm:$0x3]
      %v165 = vld [vmem:[%s138 + $0xa8] sm:$0xff]
      %v166 = vld [vmem:[%s138 + $0xb0] sm:$0xff]
      %v167 = vld [vmem:[%s138 + $0xb8] sm:$0x3]
      %v168 = vld [vmem:[%s138 + $0xc0] sm:$0xff]
      %v169 = vld [vmem:[%s138 + $0xc8] sm:$0xff]
      %v170 = vld [vmem:[%s138 + $0xd0] sm:$0x3]
      %v171 = vld [vmem:[%s138 + $0xd8] sm:$0xff]
      %v172 = vld [vmem:[%s138 + $0xe0] sm:$0xff]
      %v173 = vld [vmem:[%s138 + $0xe8] sm:$0x3]
      %v174 = vld [vmem:[%s138 + $0xf0] sm:$0xff]
      %v175 = vld [vmem:[%s138 + $0xf8] sm:$0xff]
      %v176 = vld [vmem:[%s138 + $0x100] sm:$0x3]
      %v177 = vld [vmem:[%s138 + $0x108] sm:$0xff]
      %v178 = vld [vmem:[%s138 + $0x110] sm:$0xff]
      %v179 = vld [vmem:[%s138 + $0x118] sm:$0x3]
      %v180 = vld [vmem:[%s138 + $0x120] sm:$0xff]
      %v181 = vld [vmem:[%s138 + $0x128] sm:$0xff]
      %v182 = vld [vmem:[%s138 + $0x130] sm:$0x3]
      %v183 = vld [vmem:[%s138 + $0x138] sm:$0xff]
      %v184 = vld [vmem:[%s138 + $0x140] sm:$0xff]
      %v185 = vld [vmem:[%s138 + $0x148] sm:$0x3]
      %v186 = vld [vmem:[%s138 + $0x150] sm:$0xff]
      %v187 = vld [vmem:[%s138 + $0x158] sm:$0xff]
      %v188 = vld [vmem:[%s138 + $0x160] sm:$0x3]
      %v189 = vld [vmem:[%s138 + $0x168] sm:$0xff]
      %v190 = vld [vmem:[%s138 + $0x170] sm:$0xff]
      %v191 = vld [vmem:[%s138 + $0x178] sm:$0x3]
      %v192 = vld [vmem:[%s138 + $0x180] sm:$0xff]
      %v193 = vld [vmem:[%s138 + $0x188] sm:$0xff]
      %v194 = vld [vmem:[%s138 + $0x190] sm:$0x3]
      %v195 = vld [vmem:[%s138 + $0x198] sm:$0xff]
      %v196 = vld [vmem:[%s138 + $0x1a0] sm:$0xff]
      %v197 = vld [vmem:[%s138 + $0x1a8] sm:$0x3]
      %vm198 = vcmask 31744
      %199 = vst.msk [vmem:[#allocation2] sm:$0xff] %vm198, %v144
      %200 = vst.msk [vmem:[#allocation2 + $0x8] sm:$0xff] %vm198, %v145
      %201 = vst.msk [vmem:[#allocation2 + $0x10] sm:$0xff] %vm198, %v147
      %202 = vst.msk [vmem:[#allocation2 + $0x18] sm:$0xff] %vm198, %v148
      %203 = vst.msk [vmem:[#allocation2 + $0x20] sm:$0xff] %vm198, %v150
      %204 = vst.msk [vmem:[#allocation2 + $0x28] sm:$0xff] %vm198, %v151
      %205 = vst.msk [vmem:[#allocation2 + $0x30] sm:$0xff] %vm198, %v153
      %206 = vst.msk [vmem:[#allocation2 + $0x38] sm:$0xff] %vm198, %v154
      %207 = vst.msk [vmem:[#allocation2 + $0x40] sm:$0xff] %vm198, %v156
      %208 = vst.msk [vmem:[#allocation2 + $0x48] sm:$0xff] %vm198, %v157
      %209 = vst.msk [vmem:[#allocation2 + $0x50] sm:$0xff] %vm198, %v159
      %210 = vst.msk [vmem:[#allocation2 + $0x58] sm:$0xff] %vm198, %v160
      %211 = vst.msk [vmem:[#allocation2 + $0x60] sm:$0xff] %vm198, %v162
      %212 = vst.msk [vmem:[#allocation2 + $0x68] sm:$0xff] %vm198, %v163
      %213 = vst.msk [vmem:[#allocation2 + $0x70] sm:$0xff] %vm198, %v165
      %214 = vst.msk [vmem:[#allocation2 + $0x78] sm:$0xff] %vm198, %v166
      %215 = vst.msk [vmem:[#allocation2 + $0x80] sm:$0xff] %vm198, %v168
      %216 = vst.msk [vmem:[#allocation2 + $0x88] sm:$0xff] %vm198, %v169
      %217 = vst.msk [vmem:[#allocation2 + $0x90] sm:$0xff] %vm198, %v171
      %218 = vst.msk [vmem:[#allocation2 + $0x98] sm:$0xff] %vm198, %v172
      %219 = vst.msk [vmem:[#allocation2 + $0xa0] sm:$0xff] %vm198, %v174
      %220 = vst.msk [vmem:[#allocation2 + $0xa8] sm:$0xff] %vm198, %v175
      %221 = vst.msk [vmem:[#allocation2 + $0xb0] sm:$0xff] %vm198, %v177
      %222 = vst.msk [vmem:[#allocation2 + $0xb8] sm:$0xff] %vm198, %v178
      %223 = vst.msk [vmem:[#allocation2 + $0xc0] sm:$0xff] %vm198, %v180
      %224 = vst.msk [vmem:[#allocation2 + $0xc8] sm:$0xff] %vm198, %v181
      %225 = vst.msk [vmem:[#allocation2 + $0xd0] sm:$0xff] %vm198, %v183
      %226 = vst.msk [vmem:[#allocation2 + $0xd8] sm:$0xff] %vm198, %v184
      %227 = vst.msk [vmem:[#allocation2 + $0xe0] sm:$0xff] %vm198, %v186
      %228 = vst.msk [vmem:[#allocation2 + $0xe8] sm:$0xff] %vm198, %v187
      %229 = vst.msk [vmem:[#allocation2 + $0xf0] sm:$0xff] %vm198, %v189
      %230 = vst.msk [vmem:[#allocation2 + $0xf8] sm:$0xff] %vm198, %v190
      %vm279 = vcmask 1046528
      %v280 = vrot.slane %v144, 1
      %v281 = vrot.slane %v145, 1
      %v282 = vsel %vm279, %v280, %v281
      %v283 = vrot.slane %v146, 1
      %v284 = vsel %vm279, %v281, %v283
      %v285 = vrot.slane %v147, 1
      %v286 = vrot.slane %v148, 1
      %v287 = vsel %vm279, %v285, %v286
      %v288 = vrot.slane %v149, 1
      %v289 = vsel %vm279, %v286, %v288
      %v290 = vrot.slane %v150, 1
      %v291 = vrot.slane %v151, 1
      %v292 = vsel %vm279, %v290, %v291
      %v293 = vrot.slane %v152, 1
      %v294 = vsel %vm279, %v291, %v293
      %v295 = vrot.slane %v153, 1
      %v296 = vrot.slane %v154, 1
      %v297 = vsel %vm279, %v295, %v296
      %v298 = vrot.slane %v155, 1
      %v299 = vsel %vm279, %v296, %v298
      %v300 = vrot.slane %v156, 1
      %v301 = vrot.slane %v157, 1
      %v302 = vsel %vm279, %v300, %v301
      %v303 = vrot.slane %v158, 1
      %v304 = vsel %vm279, %v301, %v303
      %v305 = vrot.slane %v159, 1
      %v306 = vrot.slane %v160, 1
      %v307 = vsel %vm279, %v305, %v306
      %v308 = vrot.slane %v161, 1
      %v309 = vsel %vm279, %v306, %v308
      %v310 = vrot.slane %v162, 1
      %v311 = vrot.slane %v163, 1
      %v312 = vsel %vm279, %v310, %v311
      %v313 = vrot.slane %v164, 1
      %v314 = vsel %vm279, %v311, %v313
      %v315 = vrot.slane %v165, 1
      %v316 = vrot.slane %v166, 1
      %v317 = vsel %vm279, %v315, %v316
      %v318 = vrot.slane %v167, 1
      %v319 = vsel %vm279, %v316, %v318
      %v320 = vrot.slane %v168, 1
      %v321 = vrot.slane %v169, 1
      %v322 = vsel %vm279, %v320, %v321
      %v323 = vrot.slane %v170, 1
      %v324 = vsel %vm279, %v321, %v323
      %v325 = vrot.slane %v171, 1
      %v326 = vrot.slane %v172, 1
      %v327 = vsel %vm279, %v325, %v326
      %v328 = vrot.slane %v173, 1
      %v329 = vsel %vm279, %v326, %v328
      %v330 = vrot.slane %v174, 1
      %v331 = vrot.slane %v175, 1
      %v332 = vsel %vm279, %v330, %v331
      %v333 = vrot.slane %v176, 1
      %v334 = vsel %vm279, %v331, %v333
      %v335 = vrot.slane %v177, 1
      %v336 = vrot.slane %v178, 1
      %v337 = vsel %vm279, %v335, %v336
      %v338 = vrot.slane %v179, 1
      %v339 = vsel %vm279, %v336, %v338
      %v340 = vrot.slane %v180, 1
      %v341 = vrot.slane %v181, 1
      %v342 = vsel %vm279, %v340, %v341
      %v343 = vrot.slane %v182, 1
      %v344 = vsel %vm279, %v341, %v343
      %v345 = vrot.slane %v183, 1
      %v346 = vrot.slane %v184, 1
      %v347 = vsel %vm279, %v345, %v346
      %v348 = vrot.slane %v185, 1
      %v349 = vsel %vm279, %v346, %v348
      %v350 = vrot.slane %v186, 1
      %v351 = vrot.slane %v187, 1
      %v352 = vsel %vm279, %v350, %v351
      %v353 = vrot.slane %v188, 1
      %v354 = vsel %vm279, %v351, %v353
      %v355 = vrot.slane %v189, 1
      %v356 = vrot.slane %v190, 1
      %v357 = vsel %vm279, %v355, %v356
      %v358 = vrot.slane %v191, 1
      %v359 = vsel %vm279, %v356, %v358
      %360 = vrot.lane.b32.xlu0 %v282, 4
      %v361 = vpop.permute.xlu0 %360
      %362 = vrot.lane.b32.xlu0 %v284, 4
      %v363 = vpop.permute.xlu0 %362
      %364 = vrot.lane.b32.xlu0 %v287, 4
      %v365 = vpop.permute.xlu0 %364
      %366 = vrot.lane.b32.xlu0 %v289, 4
      %v367 = vpop.permute.xlu0 %366
      %368 = vrot.lane.b32.xlu0 %v292, 4
      %v369 = vpop.permute.xlu0 %368
      %370 = vrot.lane.b32.xlu0 %v294, 4
      %v371 = vpop.permute.xlu0 %370
      %372 = vrot.lane.b32.xlu0 %v297, 4
      %v373 = vpop.permute.xlu0 %372
      %374 = vrot.lane.b32.xlu0 %v299, 4
      %v375 = vpop.permute.xlu0 %374
      %376 = vrot.lane.b32.xlu0 %v302, 4
      %v377 = vpop.permute.xlu0 %376
      %378 = vrot.lane.b32.xlu0 %v304, 4
      %v379 = vpop.permute.xlu0 %378
      %380 = vrot.lane.b32.xlu0 %v307, 4
      %v381 = vpop.permute.xlu0 %380
      %382 = vrot.lane.b32.xlu0 %v309, 4
      %v383 = vpop.permute.xlu0 %382
      %384 = vrot.lane.b32.xlu0 %v312, 4
      %v385 = vpop.permute.xlu0 %384
      %386 = vrot.lane.b32.xlu0 %v314, 4
      %v387 = vpop.permute.xlu0 %386
      %388 = vrot.lane.b32.xlu0 %v317, 4
      %v389 = vpop.permute.xlu0 %388
      %390 = vrot.lane.b32.xlu0 %v319, 4
      %v391 = vpop.permute.xlu0 %390
      %392 = vrot.lane.b32.xlu0 %v322, 4
      %v393 = vpop.permute.xlu0 %392
      %394 = vrot.lane.b32.xlu0 %v324, 4
      %v395 = vpop.permute.xlu0 %394
      %396 = vrot.lane.b32.xlu0 %v327, 4
      %v397 = vpop.permute.xlu0 %396
      %398 = vrot.lane.b32.xlu0 %v329, 4
      %v399 = vpop.permute.xlu0 %398
      %400 = vrot.lane.b32.xlu0 %v332, 4
      %v401 = vpop.permute.xlu0 %400
      %402 = vrot.lane.b32.xlu0 %v334, 4
      %v403 = vpop.permute.xlu0 %402
      %404 = vrot.lane.b32.xlu0 %v337, 4
      %v405 = vpop.permute.xlu0 %404
      %406 = vrot.lane.b32.xlu0 %v339, 4
      %v407 = vpop.permute.xlu0 %406
      %408 = vrot.lane.b32.xlu0 %v342, 4
      %v409 = vpop.permute.xlu0 %408
      %410 = vrot.lane.b32.xlu0 %v344, 4
      %v411 = vpop.permute.xlu0 %410
      %412 = vrot.lane.b32.xlu0 %v347, 4
      %v413 = vpop.permute.xlu0 %412
      %414 = vrot.lane.b32.xlu0 %v349, 4
      %v415 = vpop.permute.xlu0 %414
      %416 = vrot.lane.b32.xlu0 %v352, 4
      %v417 = vpop.permute.xlu0 %416
      %418 = vrot.lane.b32.xlu0 %v354, 4
      %v419 = vpop.permute.xlu0 %418
      %420 = vrot.lane.b32.xlu0 %v357, 4
      %v421 = vpop.permute.xlu0 %420
      %422 = vrot.lane.b32.xlu0 %v359, 4
      %v423 = vpop.permute.xlu0 %422
      %vm456 = vcmask 64544
      %457 = vst.msk [vmem:[#allocation2] sm:$0xff] %vm456, %v361
      %458 = vst.msk [vmem:[#allocation2 + $0x8] sm:$0xff] %vm456, %v363
      %459 = vst.msk [vmem:[#allocation2 + $0x10] sm:$0xff] %vm456, %v365
      %460 = vst.msk [vmem:[#allocation2 + $0x18] sm:$0xff] %vm456, %v367
      %461 = vst.msk [vmem:[#allocation2 + $0x20] sm:$0xff] %vm456, %v369
      %462 = vst.msk [vmem:[#allocation2 + $0x28] sm:$0xff] %vm456, %v371
      %463 = vst.msk [vmem:[#allocation2 + $0x30] sm:$0xff] %vm456, %v373
      %464 = vst.msk [vmem:[#allocation2 + $0x38] sm:$0xff] %vm456, %v375
      %465 = vst.msk [vmem:[#allocation2 + $0x40] sm:$0xff] %vm456, %v377
      %466 = vst.msk [vmem:[#allocation2 + $0x48] sm:$0xff] %vm456, %v379
      %467 = vst.msk [vmem:[#allocation2 + $0x50] sm:$0xff] %vm456, %v381
      %468 = vst.msk [vmem:[#allocation2 + $0x58] sm:$0xff] %vm456, %v383
      %469 = vst.msk [vmem:[#allocation2 + $0x60] sm:$0xff] %vm456, %v385
      %470 = vst.msk [vmem:[#allocation2 + $0x68] sm:$0xff] %vm456, %v387
      %471 = vst.msk [vmem:[#allocation2 + $0x70] sm:$0xff] %vm456, %v389
      %472 = vst.msk [vmem:[#allocation2 + $0x78] sm:$0xff] %vm456, %v391
      %473 = vst.msk [vmem:[#allocation2 + $0x80] sm:$0xff] %vm456, %v393
      %474 = vst.msk [vmem:[#allocation2 + $0x88] sm:$0xff] %vm456, %v395
      %475 = vst.msk [vmem:[#allocation2 + $0x90] sm:$0xff] %vm456, %v397
      %476 = vst.msk [vmem:[#allocation2 + $0x98] sm:$0xff] %vm456, %v399
      %477 = vst.msk [vmem:[#allocation2 + $0xa0] sm:$0xff] %vm456, %v401
      %478 = vst.msk [vmem:[#allocation2 + $0xa8] sm:$0xff] %vm456, %v403
      %479 = vst.msk [vmem:[#allocation2 + $0xb0] sm:$0xff] %vm456, %v405
      %480 = vst.msk [vmem:[#allocation2 + $0xb8] sm:$0xff] %vm456, %v407
      %481 = vst.msk [vmem:[#allocation2 + $0xc0] sm:$0xff] %vm456, %v409
      %482 = vst.msk [vmem:[#allocation2 + $0xc8] sm:$0xff] %vm456, %v411
      %483 = vst.msk [vmem:[#allocation2 + $0xd0] sm:$0xff] %vm456, %v413
      %484 = vst.msk [vmem:[#allocation2 + $0xd8] sm:$0xff] %vm456, %v415
      %485 = vst.msk [vmem:[#allocation2 + $0xe0] sm:$0xff] %vm456, %v417
      %486 = vst.msk [vmem:[#allocation2 + $0xe8] sm:$0xff] %vm456, %v419
      %487 = vst.msk [vmem:[#allocation2 + $0xf0] sm:$0xff] %vm456, %v421
      %488 = vst.msk [vmem:[#allocation2 + $0xf8] sm:$0xff] %vm456, %v423
      %vm489 = vcmask 1045504
      %v490 = vrot.slane %v144, 2
      %v491 = vrot.slane %v145, 2
      %v492 = vsel %vm489, %v490, %v491
      %v493 = vrot.slane %v146, 2
      %v494 = vsel %vm489, %v491, %v493
      %v495 = vrot.slane %v147, 2
      %v496 = vrot.slane %v148, 2
      %v497 = vsel %vm489, %v495, %v496
      %v498 = vrot.slane %v149, 2
      %v499 = vsel %vm489, %v496, %v498
      %v500 = vrot.slane %v150, 2
      %v501 = vrot.slane %v151, 2
      %v502 = vsel %vm489, %v500, %v501
      %v503 = vrot.slane %v152, 2
      %v504 = vsel %vm489, %v501, %v503
      %v505 = vrot.slane %v153, 2
      %v506 = vrot.slane %v154, 2
      %v507 = vsel %vm489, %v505, %v506
      %v508 = vrot.slane %v155, 2
      %v509 = vsel %vm489, %v506, %v508
      %v510 = vrot.slane %v156, 2
      %v511 = vrot.slane %v157, 2
      %v512 = vsel %vm489, %v510, %v511
      %v513 = vrot.slane %v158, 2
      %v514 = vsel %vm489, %v511, %v513
      %v515 = vrot.slane %v159, 2
      %v516 = vrot.slane %v160, 2
      %v517 = vsel %vm489, %v515, %v516
      %v518 = vrot.slane %v161, 2
      %v519 = vsel %vm489, %v516, %v518
      %v520 = vrot.slane %v162, 2
      %v521 = vrot.slane %v163, 2
      %v522 = vsel %vm489, %v520, %v521
      %v523 = vrot.slane %v164, 2
      %v524 = vsel %vm489, %v521, %v523
      %v525 = vrot.slane %v165, 2
      %v526 = vrot.slane %v166, 2
      %v527 = vsel %vm489, %v525, %v526
      %v528 = vrot.slane %v167, 2
      %v529 = vsel %vm489, %v526, %v528
      %v530 = vrot.slane %v168, 2
      %v531 = vrot.slane %v169, 2
      %v532 = vsel %vm489, %v530, %v531
      %v533 = vrot.slane %v170, 2
      %v534 = vsel %vm489, %v531, %v533
      %v535 = vrot.slane %v171, 2
      %v536 = vrot.slane %v172, 2
      %v537 = vsel %vm489, %v535, %v536
      %v538 = vrot.slane %v173, 2
      %v539 = vsel %vm489, %v536, %v538
      %v540 = vrot.slane %v174, 2
      %v541 = vrot.slane %v175, 2
      %v542 = vsel %vm489, %v540, %v541
      %v543 = vrot.slane %v176, 2
      %v544 = vsel %vm489, %v541, %v543
      %v545 = vrot.slane %v177, 2
      %v546 = vrot.slane %v178, 2
      %v547 = vsel %vm489, %v545, %v546
      %v548 = vrot.slane %v179, 2
      %v549 = vsel %vm489, %v546, %v548
      %v550 = vrot.slane %v180, 2
      %v551 = vrot.slane %v181, 2
      %v552 = vsel %vm489, %v550, %v551
      %v553 = vrot.slane %v182, 2
      %v554 = vsel %vm489, %v551, %v553
      %v555 = vrot.slane %v183, 2
      %v556 = vrot.slane %v184, 2
      %v557 = vsel %vm489, %v555, %v556
      %v558 = vrot.slane %v185, 2
      %v559 = vsel %vm489, %v556, %v558
      %v560 = vrot.slane %v186, 2
      %v561 = vrot.slane %v187, 2
      %v562 = vsel %vm489, %v560, %v561
      %v563 = vrot.slane %v188, 2
      %v564 = vsel %vm489, %v561, %v563
      %v565 = vrot.slane %v189, 2
      %v566 = vrot.slane %v190, 2
      %v567 = vsel %vm489, %v565, %v566
      %v568 = vrot.slane %v191, 2
      %v569 = vsel %vm489, %v566, %v568
      %570 = vrot.lane.b32.xlu0 %v492, 8
      %v571 = vpop.permute.xlu0 %570
      %572 = vrot.lane.b32.xlu0 %v494, 8
      %v573 = vpop.permute.xlu0 %572
      %574 = vrot.lane.b32.xlu0 %v497, 8
      %v575 = vpop.permute.xlu0 %574
      %576 = vrot.lane.b32.xlu0 %v499, 8
      %v577 = vpop.permute.xlu0 %576
      %578 = vrot.lane.b32.xlu0 %v502, 8
      %v579 = vpop.permute.xlu0 %578
      %580 = vrot.lane.b32.xlu0 %v504, 8
      %v581 = vpop.permute.xlu0 %580
      %582 = vrot.lane.b32.xlu0 %v507, 8
      %v583 = vpop.permute.xlu0 %582
      %584 = vrot.lane.b32.xlu0 %v509, 8
      %v585 = vpop.permute.xlu0 %584
      %586 = vrot.lane.b32.xlu0 %v512, 8
      %v587 = vpop.permute.xlu0 %586
      %588 = vrot.lane.b32.xlu0 %v514, 8
      %v589 = vpop.permute.xlu0 %588
      %590 = vrot.lane.b32.xlu0 %v517, 8
      %v591 = vpop.permute.xlu0 %590
      %592 = vrot.lane.b32.xlu0 %v519, 8
      %v593 = vpop.permute.xlu0 %592
      %594 = vrot.lane.b32.xlu0 %v522, 8
      %v595 = vpop.permute.xlu0 %594
      %596 = vrot.lane.b32.xlu0 %v524, 8
      %v597 = vpop.permute.xlu0 %596
      %598 = vrot.lane.b32.xlu0 %v527, 8
      %v599 = vpop.permute.xlu0 %598
      %600 = vrot.lane.b32.xlu0 %v529, 8
      %v601 = vpop.permute.xlu0 %600
      %602 = vrot.lane.b32.xlu0 %v532, 8
      %v603 = vpop.permute.xlu0 %602
      %604 = vrot.lane.b32.xlu0 %v534, 8
      %v605 = vpop.permute.xlu0 %604
      %606 = vrot.lane.b32.xlu0 %v537, 8
      %v607 = vpop.permute.xlu0 %606
      %608 = vrot.lane.b32.xlu0 %v539, 8
      %v609 = vpop.permute.xlu0 %608
      %610 = vrot.lane.b32.xlu0 %v542, 8
      %v611 = vpop.permute.xlu0 %610
      %612 = vrot.lane.b32.xlu0 %v544, 8
      %v613 = vpop.permute.xlu0 %612
      %614 = vrot.lane.b32.xlu0 %v547, 8
      %v615 = vpop.permute.xlu0 %614
      %616 = vrot.lane.b32.xlu0 %v549, 8
      %v617 = vpop.permute.xlu0 %616
      %618 = vrot.lane.b32.xlu0 %v552, 8
      %v619 = vpop.permute.xlu0 %618
      %620 = vrot.lane.b32.xlu0 %v554, 8
      %v621 = vpop.permute.xlu0 %620
      %622 = vrot.lane.b32.xlu0 %v557, 8
      %v623 = vpop.permute.xlu0 %622
      %624 = vrot.lane.b32.xlu0 %v559, 8
      %v625 = vpop.permute.xlu0 %624
      %626 = vrot.lane.b32.xlu0 %v562, 8
      %v627 = vpop.permute.xlu0 %626
      %628 = vrot.lane.b32.xlu0 %v564, 8
      %v629 = vpop.permute.xlu0 %628
      %630 = vrot.lane.b32.xlu0 %v567, 8
      %v631 = vpop.permute.xlu0 %630
      %632 = vrot.lane.b32.xlu0 %v569, 8
      %v633 = vpop.permute.xlu0 %632
      %vm666 = vcmask 97344
      %667 = vst.msk [vmem:[#allocation2] sm:$0xff] %vm666, %v571
      %668 = vst.msk [vmem:[#allocation2 + $0x8] sm:$0xff] %vm666, %v573
      %669 = vst.msk [vmem:[#allocation2 + $0x10] sm:$0xff] %vm666, %v575
      %670 = vst.msk [vmem:[#allocation2 + $0x18] sm:$0xff] %vm666, %v577
      %671 = vst.msk [vmem:[#allocation2 + $0x20] sm:$0xff] %vm666, %v579
      %672 = vst.msk [vmem:[#allocation2 + $0x28] sm:$0xff] %vm666, %v581
      %673 = vst.msk [vmem:[#allocation2 + $0x30] sm:$0xff] %vm666, %v583
      %674 = vst.msk [vmem:[#allocation2 + $0x38] sm:$0xff] %vm666, %v585
      %675 = vst.msk [vmem:[#allocation2 + $0x40] sm:$0xff] %vm666, %v587
      %676 = vst.msk [vmem:[#allocation2 + $0x48] sm:$0xff] %vm666, %v589
      %677 = vst.msk [vmem:[#allocation2 + $0x50] sm:$0xff] %vm666, %v591
      %678 = vst.msk [vmem:[#allocation2 + $0x58] sm:$0xff] %vm666, %v593
      %679 = vst.msk [vmem:[#allocation2 + $0x60] sm:$0xff] %vm666, %v595
      %680 = vst.msk [vmem:[#allocation2 + $0x68] sm:$0xff] %vm666, %v597
      %681 = vst.msk [vmem:[#allocation2 + $0x70] sm:$0xff] %vm666, %v599
      %682 = vst.msk [vmem:[#allocation2 + $0x78] sm:$0xff] %vm666, %v601
      %683 = vst.msk [vmem:[#allocation2 + $0x80] sm:$0xff] %vm666, %v603
      %684 = vst.msk [vmem:[#allocation2 + $0x88] sm:$0xff] %vm666, %v605
      %685 = vst.msk [vmem:[#allocation2 + $0x90] sm:$0xff] %vm666, %v607
      %686 = vst.msk [vmem:[#allocation2 + $0x98] sm:$0xff] %vm666, %v609
      %687 = vst.msk [vmem:[#allocation2 + $0xa0] sm:$0xff] %vm666, %v611
      %688 = vst.msk [vmem:[#allocation2 + $0xa8] sm:$0xff] %vm666, %v613
      %689 = vst.msk [vmem:[#allocation2 + $0xb0] sm:$0xff] %vm666, %v615
      %690 = vst.msk [vmem:[#allocation2 + $0xb8] sm:$0xff] %vm666, %v617
      %691 = vst.msk [vmem:[#allocation2 + $0xc0] sm:$0xff] %vm666, %v619
      %692 = vst.msk [vmem:[#allocation2 + $0xc8] sm:$0xff] %vm666, %v621
      %693 = vst.msk [vmem:[#allocation2 + $0xd0] sm:$0xff] %vm666, %v623
      %694 = vst.msk [vmem:[#allocation2 + $0xd8] sm:$0xff] %vm666, %v625
      %695 = vst.msk [vmem:[#allocation2 + $0xe0] sm:$0xff] %vm666, %v627
      %696 = vst.msk [vmem:[#allocation2 + $0xe8] sm:$0xff] %vm666, %v629
      %697 = vst.msk [vmem:[#allocation2 + $0xf0] sm:$0xff] %vm666, %v631
      %698 = vst.msk [vmem:[#allocation2 + $0xf8] sm:$0xff] %vm666, %v633
      %701 = vrot.lane.b32.xlu0 %v147, 12
      %v702 = vpop.permute.xlu0 %701
      %703 = vrot.lane.b32.xlu0 %v148, 12
      %v704 = vpop.permute.xlu0 %703
      %705 = vrot.lane.b32.xlu0 %v150, 12
      %v706 = vpop.permute.xlu0 %705
      %707 = vrot.lane.b32.xlu0 %v151, 12
      %v708 = vpop.permute.xlu0 %707
      %709 = vrot.lane.b32.xlu0 %v153, 12
      %v710 = vpop.permute.xlu0 %709
      %711 = vrot.lane.b32.xlu0 %v154, 12
      %v712 = vpop.permute.xlu0 %711
      %713 = vrot.lane.b32.xlu0 %v156, 12
      %v714 = vpop.permute.xlu0 %713
      %715 = vrot.lane.b32.xlu0 %v157, 12
      %v716 = vpop.permute.xlu0 %715
      %717 = vrot.lane.b32.xlu0 %v159, 12
      %v718 = vpop.permute.xlu0 %717
      %719 = vrot.lane.b32.xlu0 %v160, 12
      %v720 = vpop.permute.xlu0 %719
      %721 = vrot.lane.b32.xlu0 %v162, 12
      %v722 = vpop.permute.xlu0 %721
      %723 = vrot.lane.b32.xlu0 %v163, 12
      %v724 = vpop.permute.xlu0 %723
      %725 = vrot.lane.b32.xlu0 %v165, 12
      %v726 = vpop.permute.xlu0 %725
      %727 = vrot.lane.b32.xlu0 %v166, 12
      %v728 = vpop.permute.xlu0 %727
      %729 = vrot.lane.b32.xlu0 %v168, 12
      %v730 = vpop.permute.xlu0 %729
      %731 = vrot.lane.b32.xlu0 %v169, 12
      %v732 = vpop.permute.xlu0 %731
      %733 = vrot.lane.b32.xlu0 %v171, 12
      %v734 = vpop.permute.xlu0 %733
      %735 = vrot.lane.b32.xlu0 %v172, 12
      %v736 = vpop.permute.xlu0 %735
      %737 = vrot.lane.b32.xlu0 %v174, 12
      %v738 = vpop.permute.xlu0 %737
      %739 = vrot.lane.b32.xlu0 %v175, 12
      %v740 = vpop.permute.xlu0 %739
      %741 = vrot.lane.b32.xlu0 %v177, 12
      %v742 = vpop.permute.xlu0 %741
      %743 = vrot.lane.b32.xlu0 %v178, 12
      %v744 = vpop.permute.xlu0 %743
      %745 = vrot.lane.b32.xlu0 %v180, 12
      %v746 = vpop.permute.xlu0 %745
      %747 = vrot.lane.b32.xlu0 %v181, 12
      %v748 = vpop.permute.xlu0 %747
      %749 = vrot.lane.b32.xlu0 %v183, 12
      %v750 = vpop.permute.xlu0 %749
      %751 = vrot.lane.b32.xlu0 %v184, 12
      %v752 = vpop.permute.xlu0 %751
      %753 = vrot.lane.b32.xlu0 %v186, 12
      %v754 = vpop.permute.xlu0 %753
      %755 = vrot.lane.b32.xlu0 %v187, 12
      %v756 = vpop.permute.xlu0 %755
      %757 = vrot.lane.b32.xlu0 %v189, 12
      %v758 = vpop.permute.xlu0 %757
      %759 = vrot.lane.b32.xlu0 %v190, 12
      %v760 = vpop.permute.xlu0 %759
      %761 = vrot.lane.b32.xlu0 %v192, 12
      %v762 = vpop.permute.xlu0 %761
      %763 = vrot.lane.b32.xlu0 %v193, 12
      %v764 = vpop.permute.xlu0 %763
      %vm797 = vcmask 130144
      %798 = vst.msk [vmem:[#allocation2] sm:$0xff] %vm797, %v702
      %799 = vst.msk [vmem:[#allocation2 + $0x8] sm:$0xff] %vm797, %v704
      %800 = vst.msk [vmem:[#allocation2 + $0x10] sm:$0xff] %vm797, %v706
      %801 = vst.msk [vmem:[#allocation2 + $0x18] sm:$0xff] %vm797, %v708
      %802 = vst.msk [vmem:[#allocation2 + $0x20] sm:$0xff] %vm797, %v710
      %803 = vst.msk [vmem:[#allocation2 + $0x28] sm:$0xff] %vm797, %v712
      %804 = vst.msk [vmem:[#allocation2 + $0x30] sm:$0xff] %vm797, %v714
      %805 = vst.msk [vmem:[#allocation2 + $0x38] sm:$0xff] %vm797, %v716
      %806 = vst.msk [vmem:[#allocation2 + $0x40] sm:$0xff] %vm797, %v718
      %807 = vst.msk [vmem:[#allocation2 + $0x48] sm:$0xff] %vm797, %v720
      %808 = vst.msk [vmem:[#allocation2 + $0x50] sm:$0xff] %vm797, %v722
      %809 = vst.msk [vmem:[#allocation2 + $0x58] sm:$0xff] %vm797, %v724
      %810 = vst.msk [vmem:[#allocation2 + $0x60] sm:$0xff] %vm797, %v726
      %811 = vst.msk [vmem:[#allocation2 + $0x68] sm:$0xff] %vm797, %v728
      %812 = vst.msk [vmem:[#allocation2 + $0x70] sm:$0xff] %vm797, %v730
      %813 = vst.msk [vmem:[#allocation2 + $0x78] sm:$0xff] %vm797, %v732
      %814 = vst.msk [vmem:[#allocation2 + $0x80] sm:$0xff] %vm797, %v734
      %815 = vst.msk [vmem:[#allocation2 + $0x88] sm:$0xff] %vm797, %v736
      %816 = vst.msk [vmem:[#allocation2 + $0x90] sm:$0xff] %vm797, %v738
      %817 = vst.msk [vmem:[#allocation2 + $0x98] sm:$0xff] %vm797, %v740
      %818 = vst.msk [vmem:[#allocation2 + $0xa0] sm:$0xff] %vm797, %v742
      %819 = vst.msk [vmem:[#allocation2 + $0xa8] sm:$0xff] %vm797, %v744
      %820 = vst.msk [vmem:[#allocation2 + $0xb0] sm:$0xff] %vm797, %v746
      %821 = vst.msk [vmem:[#allocation2 + $0xb8] sm:$0xff] %vm797, %v748
      %822 = vst.msk [vmem:[#allocation2 + $0xc0] sm:$0xff] %vm797, %v750
      %823 = vst.msk [vmem:[#allocation2 + $0xc8] sm:$0xff] %vm797, %v752
      %824 = vst.msk [vmem:[#allocation2 + $0xd0] sm:$0xff] %vm797, %v754
      %825 = vst.msk [vmem:[#allocation2 + $0xd8] sm:$0xff] %vm797, %v756
      %826 = vst.msk [vmem:[#allocation2 + $0xe0] sm:$0xff] %vm797, %v758
      %827 = vst.msk [vmem:[#allocation2 + $0xe8] sm:$0xff] %vm797, %v760
      %828 = vst.msk [vmem:[#allocation2 + $0xf0] sm:$0xff] %vm797, %v762
      %829 = vst.msk [vmem:[#allocation2 + $0xf8] sm:$0xff] %vm797, %v764
      %v831 = vrot.slane %v192, 1
      %v832 = vrot.slane %v193, 1
      %v833 = vsel %vm279, %v831, %v832
      %v834 = vrot.slane %v194, 1
      %v835 = vsel %vm279, %v832, %v834
      %836 = vrot.lane.b32.xlu0 %v287, 16
      %v837 = vpop.permute.xlu0 %836
      %838 = vrot.lane.b32.xlu0 %v289, 16
      %v839 = vpop.permute.xlu0 %838
      %840 = vrot.lane.b32.xlu0 %v292, 16
      %v841 = vpop.permute.xlu0 %840
      %842 = vrot.lane.b32.xlu0 %v294, 16
      %v843 = vpop.permute.xlu0 %842
      %844 = vrot.lane.b32.xlu0 %v297, 16
      %v845 = vpop.permute.xlu0 %844
      %846 = vrot.lane.b32.xlu0 %v299, 16
      %v847 = vpop.permute.xlu0 %846
      %848 = vrot.lane.b32.xlu0 %v302, 16
      %v849 = vpop.permute.xlu0 %848
      %850 = vrot.lane.b32.xlu0 %v304, 16
      %v851 = vpop.permute.xlu0 %850
      %852 = vrot.lane.b32.xlu0 %v307, 16
      %v853 = vpop.permute.xlu0 %852
      %854 = vrot.lane.b32.xlu0 %v309, 16
      %v855 = vpop.permute.xlu0 %854
      %856 = vrot.lane.b32.xlu0 %v312, 16
      %v857 = vpop.permute.xlu0 %856
      %858 = vrot.lane.b32.xlu0 %v314, 16
      %v859 = vpop.permute.xlu0 %858
      %860 = vrot.lane.b32.xlu0 %v317, 16
      %v861 = vpop.permute.xlu0 %860
      %862 = vrot.lane.b32.xlu0 %v319, 16
      %v863 = vpop.permute.xlu0 %862
      %864 = vrot.lane.b32.xlu0 %v322, 16
      %v865 = vpop.permute.xlu0 %864
      %866 = vrot.lane.b32.xlu0 %v324, 16
      %v867 = vpop.permute.xlu0 %866
      %868 = vrot.lane.b32.xlu0 %v327, 16
      %v869 = vpop.permute.xlu0 %868
      %870 = vrot.lane.b32.xlu0 %v329, 16
      %v871 = vpop.permute.xlu0 %870
      %872 = vrot.lane.b32.xlu0 %v332, 16
      %v873 = vpop.permute.xlu0 %872
      %874 = vrot.lane.b32.xlu0 %v334, 16
      %v875 = vpop.permute.xlu0 %874
      %876 = vrot.lane.b32.xlu0 %v337, 16
      %v877 = vpop.permute.xlu0 %876
      %878 = vrot.lane.b32.xlu0 %v339, 16
      %v879 = vpop.permute.xlu0 %878
      %880 = vrot.lane.b32.xlu0 %v342, 16
      %v881 = vpop.permute.xlu0 %880
      %882 = vrot.lane.b32.xlu0 %v344, 16
      %v883 = vpop.permute.xlu0 %882
      %884 = vrot.lane.b32.xlu0 %v347, 16
      %v885 = vpop.permute.xlu0 %884
      %886 = vrot.lane.b32.xlu0 %v349, 16
      %v887 = vpop.permute.xlu0 %886
      %888 = vrot.lane.b32.xlu0 %v352, 16
      %v889 = vpop.permute.xlu0 %888
      %890 = vrot.lane.b32.xlu0 %v354, 16
      %v891 = vpop.permute.xlu0 %890
      %892 = vrot.lane.b32.xlu0 %v357, 16
      %v893 = vpop.permute.xlu0 %892
      %894 = vrot.lane.b32.xlu0 %v359, 16
      %v895 = vpop.permute.xlu0 %894
      %896 = vrot.lane.b32.xlu0 %v833, 16
      %v897 = vpop.permute.xlu0 %896
      %898 = vrot.lane.b32.xlu0 %v835, 16
      %v899 = vpop.permute.xlu0 %898
      %vm932 = vcmask 162944
      %933 = vst.msk [vmem:[#allocation2] sm:$0xff] %vm932, %v837
      %934 = vst.msk [vmem:[#allocation2 + $0x8] sm:$0xff] %vm932, %v839
      %935 = vst.msk [vmem:[#allocation2 + $0x10] sm:$0xff] %vm932, %v841
      %936 = vst.msk [vmem:[#allocation2 + $0x18] sm:$0xff] %vm932, %v843
      %937 = vst.msk [vmem:[#allocation2 + $0x20] sm:$0xff] %vm932, %v845
      %938 = vst.msk [vmem:[#allocation2 + $0x28] sm:$0xff] %vm932, %v847
      %939 = vst.msk [vmem:[#allocation2 + $0x30] sm:$0xff] %vm932, %v849
      %940 = vst.msk [vmem:[#allocation2 + $0x38] sm:$0xff] %vm932, %v851
      %941 = vst.msk [vmem:[#allocation2 + $0x40] sm:$0xff] %vm932, %v853
      %942 = vst.msk [vmem:[#allocation2 + $0x48] sm:$0xff] %vm932, %v855
      %943 = vst.msk [vmem:[#allocation2 + $0x50] sm:$0xff] %vm932, %v857
      %944 = vst.msk [vmem:[#allocation2 + $0x58] sm:$0xff] %vm932, %v859
      %945 = vst.msk [vmem:[#allocation2 + $0x60] sm:$0xff] %vm932, %v861
      %946 = vst.msk [vmem:[#allocation2 + $0x68] sm:$0xff] %vm932, %v863
      %947 = vst.msk [vmem:[#allocation2 + $0x70] sm:$0xff] %vm932, %v865
      %948 = vst.msk [vmem:[#allocation2 + $0x78] sm:$0xff] %vm932, %v867
      %949 = vst.msk [vmem:[#allocation2 + $0x80] sm:$0xff] %vm932, %v869
      %950 = vst.msk [vmem:[#allocation2 + $0x88] sm:$0xff] %vm932, %v871
      %951 = vst.msk [vmem:[#allocation2 + $0x90] sm:$0xff] %vm932, %v873
      %952 = vst.msk [vmem:[#allocation2 + $0x98] sm:$0xff] %vm932, %v875
      %953 = vst.msk [vmem:[#allocation2 + $0xa0] sm:$0xff] %vm932, %v877
      %954 = vst.msk [vmem:[#allocation2 + $0xa8] sm:$0xff] %vm932, %v879
      %955 = vst.msk [vmem:[#allocation2 + $0xb0] sm:$0xff] %vm932, %v881
      %956 = vst.msk [vmem:[#allocation2 + $0xb8] sm:$0xff] %vm932, %v883
      %957 = vst.msk [vmem:[#allocation2 + $0xc0] sm:$0xff] %vm932, %v885
      %958 = vst.msk [vmem:[#allocation2 + $0xc8] sm:$0xff] %vm932, %v887
      %959 = vst.msk [vmem:[#allocation2 + $0xd0] sm:$0xff] %vm932, %v889
      %960 = vst.msk [vmem:[#allocation2 + $0xd8] sm:$0xff] %vm932, %v891
      %961 = vst.msk [vmem:[#allocation2 + $0xe0] sm:$0xff] %vm932, %v893
      %962 = vst.msk [vmem:[#allocation2 + $0xe8] sm:$0xff] %vm932, %v895
      %963 = vst.msk [vmem:[#allocation2 + $0xf0] sm:$0xff] %vm932, %v897
      %964 = vst.msk [vmem:[#allocation2 + $0xf8] sm:$0xff] %vm932, %v899
      %v965 = vrot.slane %v192, 2
      %v966 = vrot.slane %v193, 2
      %v967 = vsel %vm489, %v965, %v966
      %v968 = vrot.slane %v194, 2
      %v969 = vsel %vm489, %v966, %v968
      %970 = vrot.lane.b32.xlu0 %v497, 20
      %v971 = vpop.permute.xlu0 %970
      %972 = vrot.lane.b32.xlu0 %v499, 20
      %v973 = vpop.permute.xlu0 %972
      %974 = vrot.lane.b32.xlu0 %v502, 20
      %v975 = vpop.permute.xlu0 %974
      %976 = vrot.lane.b32.xlu0 %v504, 20
      %v977 = vpop.permute.xlu0 %976
      %978 = vrot.lane.b32.xlu0 %v507, 20
      %v979 = vpop.permute.xlu0 %978
      %980 = vrot.lane.b32.xlu0 %v509, 20
      %v981 = vpop.permute.xlu0 %980
      %982 = vrot.lane.b32.xlu0 %v512, 20
      %v983 = vpop.permute.xlu0 %982
      %984 = vrot.lane.b32.xlu0 %v514, 20
      %v985 = vpop.permute.xlu0 %984
      %986 = vrot.lane.b32.xlu0 %v517, 20
      %v987 = vpop.permute.xlu0 %986
      %988 = vrot.lane.b32.xlu0 %v519, 20
      %v989 = vpop.permute.xlu0 %988
      %990 = vrot.lane.b32.xlu0 %v522, 20
      %v991 = vpop.permute.xlu0 %990
      %992 = vrot.lane.b32.xlu0 %v524, 20
      %v993 = vpop.permute.xlu0 %992
      %994 = vrot.lane.b32.xlu0 %v527, 20
      %v995 = vpop.permute.xlu0 %994
      %996 = vrot.lane.b32.xlu0 %v529, 20
      %v997 = vpop.permute.xlu0 %996
      %998 = vrot.lane.b32.xlu0 %v532, 20
      %v999 = vpop.permute.xlu0 %998
      %1000 = vrot.lane.b32.xlu0 %v534, 20
      %v1001 = vpop.permute.xlu0 %1000
      %1002 = vrot.lane.b32.xlu0 %v537, 20
      %v1003 = vpop.permute.xlu0 %1002
      %1004 = vrot.lane.b32.xlu0 %v539, 20
      %v1005 = vpop.permute.xlu0 %1004
      %1006 = vrot.lane.b32.xlu0 %v542, 20
      %v1007 = vpop.permute.xlu0 %1006
      %1008 = vrot.lane.b32.xlu0 %v544, 20
      %v1009 = vpop.permute.xlu0 %1008
      %1010 = vrot.lane.b32.xlu0 %v547, 20
      %v1011 = vpop.permute.xlu0 %1010
      %1012 = vrot.lane.b32.xlu0 %v549, 20
      %v1013 = vpop.permute.xlu0 %1012
      %1014 = vrot.lane.b32.xlu0 %v552, 20
      %v1015 = vpop.permute.xlu0 %1014
      %1016 = vrot.lane.b32.xlu0 %v554, 20
      %v1017 = vpop.permute.xlu0 %1016
      %1018 = vrot.lane.b32.xlu0 %v557, 20
      %v1019 = vpop.permute.xlu0 %1018
      %1020 = vrot.lane.b32.xlu0 %v559, 20
      %v1021 = vpop.permute.xlu0 %1020
      %1022 = vrot.lane.b32.xlu0 %v562, 20
      %v1023 = vpop.permute.xlu0 %1022
      %1024 = vrot.lane.b32.xlu0 %v564, 20
      %v1025 = vpop.permute.xlu0 %1024
      %1026 = vrot.lane.b32.xlu0 %v567, 20
      %v1027 = vpop.permute.xlu0 %1026
      %1028 = vrot.lane.b32.xlu0 %v569, 20
      %v1029 = vpop.permute.xlu0 %1028
      %1030 = vrot.lane.b32.xlu0 %v967, 20
      %v1031 = vpop.permute.xlu0 %1030
      %1032 = vrot.lane.b32.xlu0 %v969, 20
      %v1033 = vpop.permute.xlu0 %1032
      %vm1066 = vcmask 195744
      %1067 = vst.msk [vmem:[#allocation2] sm:$0xff] %vm1066, %v971
      %1068 = vst.msk [vmem:[#allocation2 + $0x8] sm:$0xff] %vm1066, %v973
      %1069 = vst.msk [vmem:[#allocation2 + $0x10] sm:$0xff] %vm1066, %v975
      %1070 = vst.msk [vmem:[#allocation2 + $0x18] sm:$0xff] %vm1066, %v977
      %1071 = vst.msk [vmem:[#allocation2 + $0x20] sm:$0xff] %vm1066, %v979
      %1072 = vst.msk [vmem:[#allocation2 + $0x28] sm:$0xff] %vm1066, %v981
      %1073 = vst.msk [vmem:[#allocation2 + $0x30] sm:$0xff] %vm1066, %v983
      %1074 = vst.msk [vmem:[#allocation2 + $0x38] sm:$0xff] %vm1066, %v985
      %1075 = vst.msk [vmem:[#allocation2 + $0x40] sm:$0xff] %vm1066, %v987
      %1076 = vst.msk [vmem:[#allocation2 + $0x48] sm:$0xff] %vm1066, %v989
      %1077 = vst.msk [vmem:[#allocation2 + $0x50] sm:$0xff] %vm1066, %v991
      %1078 = vst.msk [vmem:[#allocation2 + $0x58] sm:$0xff] %vm1066, %v993
      %1079 = vst.msk [vmem:[#allocation2 + $0x60] sm:$0xff] %vm1066, %v995
      %1080 = vst.msk [vmem:[#allocation2 + $0x68] sm:$0xff] %vm1066, %v997
      %1081 = vst.msk [vmem:[#allocation2 + $0x70] sm:$0xff] %vm1066, %v999
      %1082 = vst.msk [vmem:[#allocation2 + $0x78] sm:$0xff] %vm1066, %v1001
      %1083 = vst.msk [vmem:[#allocation2 + $0x80] sm:$0xff] %vm1066, %v1003
      %1084 = vst.msk [vmem:[#allocation2 + $0x88] sm:$0xff] %vm1066, %v1005
      %1085 = vst.msk [vmem:[#allocation2 + $0x90] sm:$0xff] %vm1066, %v1007
      %1086 = vst.msk [vmem:[#allocation2 + $0x98] sm:$0xff] %vm1066, %v1009
      %1087 = vst.msk [vmem:[#allocation2 + $0xa0] sm:$0xff] %vm1066, %v1011
      %1088 = vst.msk [vmem:[#allocation2 + $0xa8] sm:$0xff] %vm1066, %v1013
      %1089 = vst.msk [vmem:[#allocation2 + $0xb0] sm:$0xff] %vm1066, %v1015
      %1090 = vst.msk [vmem:[#allocation2 + $0xb8] sm:$0xff] %vm1066, %v1017
      %1091 = vst.msk [vmem:[#allocation2 + $0xc0] sm:$0xff] %vm1066, %v1019
      %1092 = vst.msk [vmem:[#allocation2 + $0xc8] sm:$0xff] %vm1066, %v1021
      %1093 = vst.msk [vmem:[#allocation2 + $0xd0] sm:$0xff] %vm1066, %v1023
      %1094 = vst.msk [vmem:[#allocation2 + $0xd8] sm:$0xff] %vm1066, %v1025
      %1095 = vst.msk [vmem:[#allocation2 + $0xe0] sm:$0xff] %vm1066, %v1027
      %1096 = vst.msk [vmem:[#allocation2 + $0xe8] sm:$0xff] %vm1066, %v1029
      %1097 = vst.msk [vmem:[#allocation2 + $0xf0] sm:$0xff] %vm1066, %v1031
      %1098 = vst.msk [vmem:[#allocation2 + $0xf8] sm:$0xff] %vm1066, %v1033
      %1101 = vrot.lane.b32.xlu0 %v150, 24
      %v1102 = vpop.permute.xlu0 %1101
      %1103 = vrot.lane.b32.xlu0 %v151, 24
      %v1104 = vpop.permute.xlu0 %1103
      %1105 = vrot.lane.b32.xlu0 %v153, 24
      %v1106 = vpop.permute.xlu0 %1105
      %1107 = vrot.lane.b32.xlu0 %v154, 24
      %v1108 = vpop.permute.xlu0 %1107
      %1109 = vrot.lane.b32.xlu0 %v156, 24
      %v1110 = vpop.permute.xlu0 %1109
      %1111 = vrot.lane.b32.xlu0 %v157, 24
      %v1112 = vpop.permute.xlu0 %1111
      %1113 = vrot.lane.b32.xlu0 %v159, 24
      %v1114 = vpop.permute.xlu0 %1113
      %1115 = vrot.lane.b32.xlu0 %v160, 24
      %v1116 = vpop.permute.xlu0 %1115
      %1117 = vrot.lane.b32.xlu0 %v162, 24
      %v1118 = vpop.permute.xlu0 %1117
      %1119 = vrot.lane.b32.xlu0 %v163, 24
      %v1120 = vpop.permute.xlu0 %1119
      %1121 = vrot.lane.b32.xlu0 %v165, 24
      %v1122 = vpop.permute.xlu0 %1121
      %1123 = vrot.lane.b32.xlu0 %v166, 24
      %v1124 = vpop.permute.xlu0 %1123
      %1125 = vrot.lane.b32.xlu0 %v168, 24
      %v1126 = vpop.permute.xlu0 %1125
      %1127 = vrot.lane.b32.xlu0 %v169, 24
      %v1128 = vpop.permute.xlu0 %1127
      %1129 = vrot.lane.b32.xlu0 %v171, 24
      %v1130 = vpop.permute.xlu0 %1129
      %1131 = vrot.lane.b32.xlu0 %v172, 24
      %v1132 = vpop.permute.xlu0 %1131
      %1133 = vrot.lane.b32.xlu0 %v174, 24
      %v1134 = vpop.permute.xlu0 %1133
      %1135 = vrot.lane.b32.xlu0 %v175, 24
      %v1136 = vpop.permute.xlu0 %1135
      %1137 = vrot.lane.b32.xlu0 %v177, 24
      %v1138 = vpop.permute.xlu0 %1137
      %1139 = vrot.lane.b32.xlu0 %v178, 24
      %v1140 = vpop.permute.xlu0 %1139
      %1141 = vrot.lane.b32.xlu0 %v180, 24
      %v1142 = vpop.permute.xlu0 %1141
      %1143 = vrot.lane.b32.xlu0 %v181, 24
      %v1144 = vpop.permute.xlu0 %1143
      %1145 = vrot.lane.b32.xlu0 %v183, 24
      %v1146 = vpop.permute.xlu0 %1145
      %1147 = vrot.lane.b32.xlu0 %v184, 24
      %v1148 = vpop.permute.xlu0 %1147
      %1149 = vrot.lane.b32.xlu0 %v186, 24
      %v1150 = vpop.permute.xlu0 %1149
      %1151 = vrot.lane.b32.xlu0 %v187, 24
      %v1152 = vpop.permute.xlu0 %1151
      %1153 = vrot.lane.b32.xlu0 %v189, 24
      %v1154 = vpop.permute.xlu0 %1153
      %1155 = vrot.lane.b32.xlu0 %v190, 24
      %v1156 = vpop.permute.xlu0 %1155
      %1157 = vrot.lane.b32.xlu0 %v192, 24
      %v1158 = vpop.permute.xlu0 %1157
      %1159 = vrot.lane.b32.xlu0 %v193, 24
      %v1160 = vpop.permute.xlu0 %1159
      %1161 = vrot.lane.b32.xlu0 %v195, 24
      %v1162 = vpop.permute.xlu0 %1161
      %1163 = vrot.lane.b32.xlu0 %v196, 24
      %v1164 = vpop.permute.xlu0 %1163
      %vm1197 = vcmask 228544
      %1198 = vst.msk [vmem:[#allocation2] sm:$0xff] %vm1197, %v1102
      %1199 = vst.msk [vmem:[#allocation2 + $0x8] sm:$0xff] %vm1197, %v1104
      %1200 = vst.msk [vmem:[#allocation2 + $0x10] sm:$0xff] %vm1197, %v1106
      %1201 = vst.msk [vmem:[#allocation2 + $0x18] sm:$0xff] %vm1197, %v1108
      %1202 = vst.msk [vmem:[#allocation2 + $0x20] sm:$0xff] %vm1197, %v1110
      %1203 = vst.msk [vmem:[#allocation2 + $0x28] sm:$0xff] %vm1197, %v1112
      %1204 = vst.msk [vmem:[#allocation2 + $0x30] sm:$0xff] %vm1197, %v1114
      %1205 = vst.msk [vmem:[#allocation2 + $0x38] sm:$0xff] %vm1197, %v1116
      %1206 = vst.msk [vmem:[#allocation2 + $0x40] sm:$0xff] %vm1197, %v1118
      %1207 = vst.msk [vmem:[#allocation2 + $0x48] sm:$0xff] %vm1197, %v1120
      %1208 = vst.msk [vmem:[#allocation2 + $0x50] sm:$0xff] %vm1197, %v1122
      %1209 = vst.msk [vmem:[#allocation2 + $0x58] sm:$0xff] %vm1197, %v1124
      %1210 = vst.msk [vmem:[#allocation2 + $0x60] sm:$0xff] %vm1197, %v1126
      %1211 = vst.msk [vmem:[#allocation2 + $0x68] sm:$0xff] %vm1197, %v1128
      %1212 = vst.msk [vmem:[#allocation2 + $0x70] sm:$0xff] %vm1197, %v1130
      %1213 = vst.msk [vmem:[#allocation2 + $0x78] sm:$0xff] %vm1197, %v1132
      %1214 = vst.msk [vmem:[#allocation2 + $0x80] sm:$0xff] %vm1197, %v1134
      %1215 = vst.msk [vmem:[#allocation2 + $0x88] sm:$0xff] %vm1197, %v1136
      %1216 = vst.msk [vmem:[#allocation2 + $0x90] sm:$0xff] %vm1197, %v1138
      %1217 = vst.msk [vmem:[#allocation2 + $0x98] sm:$0xff] %vm1197, %v1140
      %1218 = vst.msk [vmem:[#allocation2 + $0xa0] sm:$0xff] %vm1197, %v1142
      %1219 = vst.msk [vmem:[#allocation2 + $0xa8] sm:$0xff] %vm1197, %v1144
      %1220 = vst.msk [vmem:[#allocation2 + $0xb0] sm:$0xff] %vm1197, %v1146
      %1221 = vst.msk [vmem:[#allocation2 + $0xb8] sm:$0xff] %vm1197, %v1148
      %1222 = vst.msk [vmem:[#allocation2 + $0xc0] sm:$0xff] %vm1197, %v1150
      %1223 = vst.msk [vmem:[#allocation2 + $0xc8] sm:$0xff] %vm1197, %v1152
      %1224 = vst.msk [vmem:[#allocation2 + $0xd0] sm:$0xff] %vm1197, %v1154
      %1225 = vst.msk [vmem:[#allocation2 + $0xd8] sm:$0xff] %vm1197, %v1156
      %1226 = vst.msk [vmem:[#allocation2 + $0xe0] sm:$0xff] %vm1197, %v1158
      %1227 = vst.msk [vmem:[#allocation2 + $0xe8] sm:$0xff] %vm1197, %v1160
      %1228 = vst.msk [vmem:[#allocation2 + $0xf0] sm:$0xff] %vm1197, %v1162
      %1229 = vst.msk [vmem:[#allocation2 + $0xf8] sm:$0xff] %vm1197, %v1164
      %v1231 = vrot.slane %v195, 1
      %v1232 = vrot.slane %v196, 1
      %v1233 = vsel %vm279, %v1231, %v1232
      %v1234 = vrot.slane %v197, 1
      %v1235 = vsel %vm279, %v1232, %v1234
      %1236 = vrot.lane.b32.xlu0 %v292, 28
      %v1237 = vpop.permute.xlu0 %1236
      %1238 = vrot.lane.b32.xlu0 %v294, 28
      %v1239 = vpop.permute.xlu0 %1238
      %1240 = vrot.lane.b32.xlu0 %v297, 28
      %v1241 = vpop.permute.xlu0 %1240
      %1242 = vrot.lane.b32.xlu0 %v299, 28
      %v1243 = vpop.permute.xlu0 %1242
      %1244 = vrot.lane.b32.xlu0 %v302, 28
      %v1245 = vpop.permute.xlu0 %1244
      %1246 = vrot.lane.b32.xlu0 %v304, 28
      %v1247 = vpop.permute.xlu0 %1246
      %1248 = vrot.lane.b32.xlu0 %v307, 28
      %v1249 = vpop.permute.xlu0 %1248
      %1250 = vrot.lane.b32.xlu0 %v309, 28
      %v1251 = vpop.permute.xlu0 %1250
      %1252 = vrot.lane.b32.xlu0 %v312, 28
      %v1253 = vpop.permute.xlu0 %1252
      %1254 = vrot.lane.b32.xlu0 %v314, 28
      %v1255 = vpop.permute.xlu0 %1254
      %1256 = vrot.lane.b32.xlu0 %v317, 28
      %v1257 = vpop.permute.xlu0 %1256
      %1258 = vrot.lane.b32.xlu0 %v319, 28
      %v1259 = vpop.permute.xlu0 %1258
      %1260 = vrot.lane.b32.xlu0 %v322, 28
      %v1261 = vpop.permute.xlu0 %1260
      %1262 = vrot.lane.b32.xlu0 %v324, 28
      %v1263 = vpop.permute.xlu0 %1262
      %1264 = vrot.lane.b32.xlu0 %v327, 28
      %v1265 = vpop.permute.xlu0 %1264
      %1266 = vrot.lane.b32.xlu0 %v329, 28
      %v1267 = vpop.permute.xlu0 %1266
      %1268 = vrot.lane.b32.xlu0 %v332, 28
      %v1269 = vpop.permute.xlu0 %1268
      %1270 = vrot.lane.b32.xlu0 %v334, 28
      %v1271 = vpop.permute.xlu0 %1270
      %1272 = vrot.lane.b32.xlu0 %v337, 28
      %v1273 = vpop.permute.xlu0 %1272
      %1274 = vrot.lane.b32.xlu0 %v339, 28
      %v1275 = vpop.permute.xlu0 %1274
      %1276 = vrot.lane.b32.xlu0 %v342, 28
      %v1277 = vpop.permute.xlu0 %1276
      %1278 = vrot.lane.b32.xlu0 %v344, 28
      %v1279 = vpop.permute.xlu0 %1278
      %1280 = vrot.lane.b32.xlu0 %v347, 28
      %v1281 = vpop.permute.xlu0 %1280
      %1282 = vrot.lane.b32.xlu0 %v349, 28
      %v1283 = vpop.permute.xlu0 %1282
      %1284 = vrot.lane.b32.xlu0 %v352, 28
      %v1285 = vpop.permute.xlu0 %1284
      %1286 = vrot.lane.b32.xlu0 %v354, 28
      %v1287 = vpop.permute.xlu0 %1286
      %1288 = vrot.lane.b32.xlu0 %v357, 28
      %v1289 = vpop.permute.xlu0 %1288
      %1290 = vrot.lane.b32.xlu0 %v359, 28
      %v1291 = vpop.permute.xlu0 %1290
      %1292 = vrot.lane.b32.xlu0 %v833, 28
      %v1293 = vpop.permute.xlu0 %1292
      %1294 = vrot.lane.b32.xlu0 %v835, 28
      %v1295 = vpop.permute.xlu0 %1294
      %1296 = vrot.lane.b32.xlu0 %v1233, 28
      %v1297 = vpop.permute.xlu0 %1296
      %1298 = vrot.lane.b32.xlu0 %v1235, 28
      %v1299 = vpop.permute.xlu0 %1298
      %vm1332 = vcmask 261344
      %1333 = vst.msk [vmem:[#allocation2] sm:$0xff] %vm1332, %v1237
      %1334 = vst.msk [vmem:[#allocation2 + $0x8] sm:$0xff] %vm1332, %v1239
      %1335 = vst.msk [vmem:[#allocation2 + $0x10] sm:$0xff] %vm1332, %v1241
      %1336 = vst.msk [vmem:[#allocation2 + $0x18] sm:$0xff] %vm1332, %v1243
      %1337 = vst.msk [vmem:[#allocation2 + $0x20] sm:$0xff] %vm1332, %v1245
      %1338 = vst.msk [vmem:[#allocation2 + $0x28] sm:$0xff] %vm1332, %v1247
      %1339 = vst.msk [vmem:[#allocation2 + $0x30] sm:$0xff] %vm1332, %v1249
      %1340 = vst.msk [vmem:[#allocation2 + $0x38] sm:$0xff] %vm1332, %v1251
      %1341 = vst.msk [vmem:[#allocation2 + $0x40] sm:$0xff] %vm1332, %v1253
      %1342 = vst.msk [vmem:[#allocation2 + $0x48] sm:$0xff] %vm1332, %v1255
      %1343 = vst.msk [vmem:[#allocation2 + $0x50] sm:$0xff] %vm1332, %v1257
      %1344 = vst.msk [vmem:[#allocation2 + $0x58] sm:$0xff] %vm1332, %v1259
      %1345 = vst.msk [vmem:[#allocation2 + $0x60] sm:$0xff] %vm1332, %v1261
      %1346 = vst.msk [vmem:[#allocation2 + $0x68] sm:$0xff] %vm1332, %v1263
      %1347 = vst.msk [vmem:[#allocation2 + $0x70] sm:$0xff] %vm1332, %v1265
      %1348 = vst.msk [vmem:[#allocation2 + $0x78] sm:$0xff] %vm1332, %v1267
      %1349 = vst.msk [vmem:[#allocation2 + $0x80] sm:$0xff] %vm1332, %v1269
      %1350 = vst.msk [vmem:[#allocation2 + $0x88] sm:$0xff] %vm1332, %v1271
      %1351 = vst.msk [vmem:[#allocation2 + $0x90] sm:$0xff] %vm1332, %v1273
      %1352 = vst.msk [vmem:[#allocation2 + $0x98] sm:$0xff] %vm1332, %v1275
      %1353 = vst.msk [vmem:[#allocation2 + $0xa0] sm:$0xff] %vm1332, %v1277
      %1354 = vst.msk [vmem:[#allocation2 + $0xa8] sm:$0xff] %vm1332, %v1279
      %1355 = vst.msk [vmem:[#allocation2 + $0xb0] sm:$0xff] %vm1332, %v1281
      %1356 = vst.msk [vmem:[#allocation2 + $0xb8] sm:$0xff] %vm1332, %v1283
      %1357 = vst.msk [vmem:[#allocation2 + $0xc0] sm:$0xff] %vm1332, %v1285
      %1358 = vst.msk [vmem:[#allocation2 + $0xc8] sm:$0xff] %vm1332, %v1287
      %1359 = vst.msk [vmem:[#allocation2 + $0xd0] sm:$0xff] %vm1332, %v1289
      %1360 = vst.msk [vmem:[#allocation2 + $0xd8] sm:$0xff] %vm1332, %v1291
      %1361 = vst.msk [vmem:[#allocation2 + $0xe0] sm:$0xff] %vm1332, %v1293
      %1362 = vst.msk [vmem:[#allocation2 + $0xe8] sm:$0xff] %vm1332, %v1295
      %1363 = vst.msk [vmem:[#allocation2 + $0xf0] sm:$0xff] %vm1332, %v1297
      %1364 = vst.msk [vmem:[#allocation2 + $0xf8] sm:$0xff] %vm1332, %v1299
      %v1365 = vrot.slane %v195, 2
      %v1366 = vrot.slane %v196, 2
      %v1367 = vsel %vm489, %v1365, %v1366
      %v1368 = vrot.slane %v197, 2
      %v1369 = vsel %vm489, %v1366, %v1368
      %1370 = vrot.lane.b32.xlu0 %v502, 32
      %v1371 = vpop.permute.xlu0 %1370
      %1372 = vrot.lane.b32.xlu0 %v504, 32
      %v1373 = vpop.permute.xlu0 %1372
      %1374 = vrot.lane.b32.xlu0 %v507, 32
      %v1375 = vpop.permute.xlu0 %1374
      %1376 = vrot.lane.b32.xlu0 %v509, 32
      %v1377 = vpop.permute.xlu0 %1376
      %1378 = vrot.lane.b32.xlu0 %v512, 32
      %v1379 = vpop.permute.xlu0 %1378
      %1380 = vrot.lane.b32.xlu0 %v514, 32
      %v1381 = vpop.permute.xlu0 %1380
      %1382 = vrot.lane.b32.xlu0 %v517, 32
      %v1383 = vpop.permute.xlu0 %1382
      %1384 = vrot.lane.b32.xlu0 %v519, 32
      %v1385 = vpop.permute.xlu0 %1384
      %1386 = vrot.lane.b32.xlu0 %v522, 32
      %v1387 = vpop.permute.xlu0 %1386
      %1388 = vrot.lane.b32.xlu0 %v524, 32
      %v1389 = vpop.permute.xlu0 %1388
      %1390 = vrot.lane.b32.xlu0 %v527, 32
      %v1391 = vpop.permute.xlu0 %1390
      %1392 = vrot.lane.b32.xlu0 %v529, 32
      %v1393 = vpop.permute.xlu0 %1392
      %1394 = vrot.lane.b32.xlu0 %v532, 32
      %v1395 = vpop.permute.xlu0 %1394
      %1396 = vrot.lane.b32.xlu0 %v534, 32
      %v1397 = vpop.permute.xlu0 %1396
      %1398 = vrot.lane.b32.xlu0 %v537, 32
      %v1399 = vpop.permute.xlu0 %1398
      %1400 = vrot.lane.b32.xlu0 %v539, 32
      %v1401 = vpop.permute.xlu0 %1400
      %1402 = vrot.lane.b32.xlu0 %v542, 32
      %v1403 = vpop.permute.xlu0 %1402
      %1404 = vrot.lane.b32.xlu0 %v544, 32
      %v1405 = vpop.permute.xlu0 %1404
      %1406 = vrot.lane.b32.xlu0 %v547, 32
      %v1407 = vpop.permute.xlu0 %1406
      %1408 = vrot.lane.b32.xlu0 %v549, 32
      %v1409 = vpop.permute.xlu0 %1408
      %1410 = vrot.lane.b32.xlu0 %v552, 32
      %v1411 = vpop.permute.xlu0 %1410
      %1412 = vrot.lane.b32.xlu0 %v554, 32
      %v1413 = vpop.permute.xlu0 %1412
      %1414 = vrot.lane.b32.xlu0 %v557, 32
      %v1415 = vpop.permute.xlu0 %1414
      %1416 = vrot.lane.b32.xlu0 %v559, 32
      %v1417 = vpop.permute.xlu0 %1416
      %1418 = vrot.lane.b32.xlu0 %v562, 32
      %v1419 = vpop.permute.xlu0 %1418
      %1420 = vrot.lane.b32.xlu0 %v564, 32
      %v1421 = vpop.permute.xlu0 %1420
      %1422 = vrot.lane.b32.xlu0 %v567, 32
      %v1423 = vpop.permute.xlu0 %1422
      %1424 = vrot.lane.b32.xlu0 %v569, 32
      %v1425 = vpop.permute.xlu0 %1424
      %1426 = vrot.lane.b32.xlu0 %v967, 32
      %v1427 = vpop.permute.xlu0 %1426
      %1428 = vrot.lane.b32.xlu0 %v969, 32
      %v1429 = vpop.permute.xlu0 %1428
      %1430 = vrot.lane.b32.xlu0 %v1367, 32
      %v1431 = vpop.permute.xlu0 %1430
      %1432 = vrot.lane.b32.xlu0 %v1369, 32
      %v1433 = vpop.permute.xlu0 %1432
      %vm1466 = vcmask 294144
      %1467 = vst.msk [vmem:[#allocation2] sm:$0xff] %vm1466, %v1371
      %1468 = vst.msk [vmem:[#allocation2 + $0x8] sm:$0xff] %vm1466, %v1373
      %1469 = vst.msk [vmem:[#allocation2 + $0x10] sm:$0xff] %vm1466, %v1375
      %1470 = vst.msk [vmem:[#allocation2 + $0x18] sm:$0xff] %vm1466, %v1377
      %1471 = vst.msk [vmem:[#allocation2 + $0x20] sm:$0xff] %vm1466, %v1379
      %1472 = vst.msk [vmem:[#allocation2 + $0x28] sm:$0xff] %vm1466, %v1381
      %1473 = vst.msk [vmem:[#allocation2 + $0x30] sm:$0xff] %vm1466, %v1383
      %1474 = vst.msk [vmem:[#allocation2 + $0x38] sm:$0xff] %vm1466, %v1385
      %1475 = vst.msk [vmem:[#allocation2 + $0x40] sm:$0xff] %vm1466, %v1387
      %1476 = vst.msk [vmem:[#allocation2 + $0x48] sm:$0xff] %vm1466, %v1389
      %1477 = vst.msk [vmem:[#allocation2 + $0x50] sm:$0xff] %vm1466, %v1391
      %1478 = vst.msk [vmem:[#allocation2 + $0x58] sm:$0xff] %vm1466, %v1393
      %1479 = vst.msk [vmem:[#allocation2 + $0x60] sm:$0xff] %vm1466, %v1395
      %1480 = vst.msk [vmem:[#allocation2 + $0x68] sm:$0xff] %vm1466, %v1397
      %1481 = vst.msk [vmem:[#allocation2 + $0x70] sm:$0xff] %vm1466, %v1399
      %1482 = vst.msk [vmem:[#allocation2 + $0x78] sm:$0xff] %vm1466, %v1401
      %1483 = vst.msk [vmem:[#allocation2 + $0x80] sm:$0xff] %vm1466, %v1403
      %1484 = vst.msk [vmem:[#allocation2 + $0x88] sm:$0xff] %vm1466, %v1405
      %1485 = vst.msk [vmem:[#allocation2 + $0x90] sm:$0xff] %vm1466, %v1407
      %1486 = vst.msk [vmem:[#allocation2 + $0x98] sm:$0xff] %vm1466, %v1409
      %1487 = vst.msk [vmem:[#allocation2 + $0xa0] sm:$0xff] %vm1466, %v1411
      %1488 = vst.msk [vmem:[#allocation2 + $0xa8] sm:$0xff] %vm1466, %v1413
      %1489 = vst.msk [vmem:[#allocation2 + $0xb0] sm:$0xff] %vm1466, %v1415
      %1490 = vst.msk [vmem:[#allocation2 + $0xb8] sm:$0xff] %vm1466, %v1417
      %1491 = vst.msk [vmem:[#allocation2 + $0xc0] sm:$0xff] %vm1466, %v1419
      %1492 = vst.msk [vmem:[#allocation2 + $0xc8] sm:$0xff] %vm1466, %v1421
      %1493 = vst.msk [vmem:[#allocation2 + $0xd0] sm:$0xff] %vm1466, %v1423
      %1494 = vst.msk [vmem:[#allocation2 + $0xd8] sm:$0xff] %vm1466, %v1425
      %1495 = vst.msk [vmem:[#allocation2 + $0xe0] sm:$0xff] %vm1466, %v1427
      %1496 = vst.msk [vmem:[#allocation2 + $0xe8] sm:$0xff] %vm1466, %v1429
      %1497 = vst.msk [vmem:[#allocation2 + $0xf0] sm:$0xff] %vm1466, %v1431
      %1498 = vst.msk [vmem:[#allocation2 + $0xf8] sm:$0xff] %vm1466, %v1433
      %v1499 = vld [vmem:[%s1] sm:$0xff]
      %v1500 = vld [vmem:[#allocation2] sm:$0xff]
      %v1501 = vld [vmem:[#allocation2 + $0x8] sm:$0xff]
      %v1502 = vld [vmem:[#allocation2 + $0x10] sm:$0xff]
      %v1503 = vld [vmem:[#allocation2 + $0x18] sm:$0xff]
      %v1504 = vld [vmem:[#allocation2 + $0x20] sm:$0xff]
      %v1505 = vld [vmem:[#allocation2 + $0x28] sm:$0xff]
      %v1506 = vld [vmem:[#allocation2 + $0x30] sm:$0xff]
      %v1507 = vld [vmem:[#allocation2 + $0x38] sm:$0xff]
      %v1508 = vld [vmem:[#allocation2 + $0x40] sm:$0xff]
      %v1509 = vld [vmem:[#allocation2 + $0x48] sm:$0xff]
      %v1510 = vld [vmem:[#allocation2 + $0x50] sm:$0xff]
      %v1511 = vld [vmem:[#allocation2 + $0x58] sm:$0xff]
      %v1512 = vld [vmem:[#allocation2 + $0x60] sm:$0xff]
      %v1513 = vld [vmem:[#allocation2 + $0x68] sm:$0xff]
      %v1514 = vld [vmem:[#allocation2 + $0x70] sm:$0xff]
      %v1515 = vld [vmem:[#allocation2 + $0x78] sm:$0xff]
      %v1516 = vld [vmem:[#allocation2 + $0x80] sm:$0xff]
      %v1517 = vld [vmem:[#allocation2 + $0x88] sm:$0xff]
      %v1518 = vld [vmem:[#allocation2 + $0x90] sm:$0xff]
      %v1519 = vld [vmem:[#allocation2 + $0x98] sm:$0xff]
      %v1520 = vld [vmem:[#allocation2 + $0xa0] sm:$0xff]
      %v1521 = vld [vmem:[#allocation2 + $0xa8] sm:$0xff]
      %v1522 = vld [vmem:[#allocation2 + $0xb0] sm:$0xff]
      %v1523 = vld [vmem:[#allocation2 + $0xb8] sm:$0xff]
      %v1524 = vld [vmem:[#allocation2 + $0xc0] sm:$0xff]
      %v1525 = vld [vmem:[#allocation2 + $0xc8] sm:$0xff]
      %v1526 = vld [vmem:[#allocation2 + $0xd0] sm:$0xff]
      %v1527 = vld [vmem:[#allocation2 + $0xd8] sm:$0xff]
      %v1528 = vld [vmem:[#allocation2 + $0xe0] sm:$0xff]
      %v1529 = vld [vmem:[#allocation2 + $0xe8] sm:$0xff]
      %v1530 = vld [vmem:[#allocation2 + $0xf0] sm:$0xff]
      %v1531 = vld [vmem:[#allocation2 + $0xf8] sm:$0xff]
      %vm1532 = vcmask 293888
      %v1534 = vsel %vm1532, %v1499, 0
      %v1537 = vsel %vm1532, %v1500, 0
      %v1540 = vsel %vm1532, %v1501, 0
      %v1543 = vsel %vm1532, %v1502, 0
      %v1546 = vsel %vm1532, %v1503, 0
      %v1549 = vsel %vm1532, %v1504, 0
      %v1552 = vsel %vm1532, %v1505, 0
      %v1555 = vsel %vm1532, %v1506, 0
      %v1558 = vsel %vm1532, %v1507, 0
      %v1561 = vsel %vm1532, %v1508, 0
      %v1564 = vsel %vm1532, %v1509, 0
      %v1567 = vsel %vm1532, %v1510, 0
      %v1570 = vsel %vm1532, %v1511, 0
      %v1573 = vsel %vm1532, %v1512, 0
      %v1576 = vsel %vm1532, %v1513, 0
      %v1579 = vsel %vm1532, %v1514, 0
      %v1582 = vsel %vm1532, %v1515, 0
      %v1585 = vsel %vm1532, %v1516, 0
      %v1588 = vsel %vm1532, %v1517, 0
      %v1591 = vsel %vm1532, %v1518, 0
      %v1594 = vsel %vm1532, %v1519, 0
      %v1597 = vsel %vm1532, %v1520, 0
      %v1600 = vsel %vm1532, %v1521, 0
      %v1603 = vsel %vm1532, %v1522, 0
      %v1606 = vsel %vm1532, %v1523, 0
      %v1609 = vsel %vm1532, %v1524, 0
      %v1612 = vsel %vm1532, %v1525, 0
      %v1615 = vsel %vm1532, %v1526, 0
      %v1618 = vsel %vm1532, %v1527, 0
      %v1621 = vsel %vm1532, %v1528, 0
      %v1624 = vsel %vm1532, %v1529, 0
      %v1627 = vsel %vm1532, %v1530, 0
      %v1630 = vsel %vm1532, %v1531, 0
      %1632 = vmatpush.xpose.msra.mxu0 %v1582
      %1633 = vmatpush.xpose.msra.mxu0 %v1579
      %1634 = vmatpush.xpose.msra.mxu0 %v1576
      %1635 = vmatpush.xpose.msra.mxu0 %v1573
      %1636 = vmatpush.xpose.msra.mxu0 %v1570
      %1637 = vmatpush.xpose.msra.mxu0 %v1567
      %1638 = vmatpush.xpose.msra.mxu0 %v1564
      %1639 = vmatpush.xpose.msra.mxu0 %v1561
      %1640 = vmatpush.xpose.msra.mxu0 %v1558
      %1641 = vmatpush.xpose.msra.mxu0 %v1555
      %1642 = vmatpush.xpose.msra.mxu0 %v1552
      %1643 = vmatpush.xpose.msra.mxu0 %v1549
      %1644 = vmatpush.xpose.msra.mxu0 %v1546
      %1645 = vmatpush.xpose.msra.mxu0 %v1543
      %1646 = vmatpush.xpose.msra.mxu0 %v1540
      %1647 = vmatpush.xpose.msra.mxu0 %v1537
      %1648 = vmatmul.f32.gmra.mxu0 %v1534
      %v1649 = vpop.f32.mrf.mxu0
      %v1650 = vadd.f32 0.0, %v1649
      %1651 = vdwg.mxu0
      %1652 = vmatpush.xpose.msra.mxu0 %v1630
      %1653 = vmatpush.xpose.msra.mxu0 %v1627
      %1654 = vmatpush.xpose.msra.mxu0 %v1624
      %1655 = vmatpush.xpose.msra.mxu0 %v1621
      %1656 = vmatpush.xpose.msra.mxu0 %v1618
      %1657 = vmatpush.xpose.msra.mxu0 %v1615
      %1658 = vmatpush.xpose.msra.mxu0 %v1612
      %1659 = vmatpush.xpose.msra.mxu0 %v1609
      %1660 = vmatpush.xpose.msra.mxu0 %v1606
      %1661 = vmatpush.xpose.msra.mxu0 %v1603
      %1662 = vmatpush.xpose.msra.mxu0 %v1600
      %1663 = vmatpush.xpose.msra.mxu0 %v1597
      %1664 = vmatpush.xpose.msra.mxu0 %v1594
      %1665 = vmatpush.xpose.msra.mxu0 %v1591
      %1666 = vmatpush.xpose.msra.mxu0 %v1588
      %1667 = vmatpush.xpose.msra.mxu0 %v1585
      %1668 = vmatmul.f32.gmra.mxu0 %v1534
      %v1669 = vpop.f32.mrf.mxu0
      %v1670 = vadd.f32 0.0, %v1669
      %1671 = vdwg.mxu0
      %v1672 = vadd.f32 %v1650, %v1670
      %1673 = vadd.xlane.f32.xlu0 %v1672
      %v1674 = vpop.xlane.xlu0 %1673
      %v1675 = vrcp.pop 256.0
      %v1676 = vmul.f32 256.0, %v1675
      %v1677 = vsub.f32 1.0, %v1676
      %v1678 = vmul.f32 %v1675, %v1677
      %v1679 = vadd.f32 %v1675, %v1678
      %vm1680 = vweird.f32 %v1675
      %v1681 = vsel %vm1680, %v1675, %v1679
      %v1682 = vmul.f32 %v1674, %v1681
      %v1683 = vsub.f32 %v1650, %v1682
      %v1684 = vsub.f32 %v1670, %v1682
      %v1685 = vmul.f32 %v1683, %v1683
      %v1686 = vmul.f32 %v1684, %v1684
      %v1687 = vadd.f32 %v1685, %v1686
      %1688 = vadd.xlane.f32.xlu0 %v1687
      %v1689 = vpop.xlane.xlu0 %1688
      %v1690 = vmul.f32 %v1689, %v1681
      %v1691 = vadd.f32 %v1690, 1e-05
      %v1692 = vrsqrt.pop %v1691
      %v1693 = vmul.f32 %v1692, %v1691
      %v1694 = vmul.f32 %v1693, %v1692
      %v1695 = vmul.f32 0.5, %v1694
      %v1696 = vsub.f32 1.5, %v1695
      %v1697 = vmul.f32 %v1692, %v1696
      %vm1698 = vweird.f32 %v1691
      %vm1699 = vweird.f32 %v1692
      %vm1700 = vmor %vm1698, %vm1699
      %v1701 = vsel %vm1700, %v1692, %v1697
      %v1702 = vmul.f32 %v1683, %v1701
      %v1703 = vmul.f32 %v1684, %v1701
      %vm1704 = vcmp.gt.f32.partialorder %v1702, 0.0
      %vm1705 = vcmp.gt.f32.partialorder %v1703, 0.0
      %v1706 = vmul.f32 %v1702, 0.2
      %v1707 = vmul.f32 %v1703, 0.2
      %v1708 = vsel %vm1704, %v1702, %v1706
      %v1709 = vsel %vm1705, %v1703, %v1707
      %1710 = vst [vmem:[%s143] sm:$0xff] %v1708
      %1711 = vst [vmem:[%s143 + $0x8] sm:$0xff] %v1709
      %p1712 = scmp.lt.s32.totalorder %s13, 1
      %s1713 = scalar_select %p1712, %s13, 1
      %s1714 = smul.addr %s1713, 2
      %s1715 = smul.addr %s1714, 8
      %s1716 = scalar_lea.vmem %s2, %s1715
      // Predicated region
      $region29: #{conv_block.1} parent=27 // pred_check
        %p1717 = pneg %p78
      $region30: #{conv_block.1} parent=27 // pred_check_branch
        %1719 = sbr.rel (%p1717) target = $region32
      $region31: #{conv_block.1} parent=27 // pred_region
        _
      $region32: #{conv_block.1} parent=27 // pred_fallthru
        _
    $region28: #{conv_block.1} parent=5 // pred_fallthru
      _
    %p1720 = scmp.le.s32.totalorder 2, %s8
    // Predicated region
    $region33: #{conv_block.1} parent=5 // pred_check
      %p1721 = pneg %p1720
    $region34: #{conv_block.1} parent=5 // pred_check_branch
      %1723 = sbr.rel (%p1721) target = $region36
    $region35: #{conv_block.1} parent=5 // pred_region
      %s1724 = ssub.s32 %s8, 2
      // Predicated region
      $region37: #{conv_block.1} parent=35 // pred_check
        %p1725 = pneg %p84
      $region38: #{conv_block.1} parent=35 // pred_check_branch
        %1727 = sbr.rel (%p1725) target = $region40
      $region39: #{conv_block.1} parent=35 // pred_region
        %p1728 = scmp.lt.s32.totalorder %s14, 1
        %s1729 = scalar_select %p1728, %s14, 1
        %s1730 = smul.addr %s1729, 2
        %s1731 = smul.addr %s1730, 8
        %s1732 = scalar_lea.vmem %s2, %s1731
      $region40: #{conv_block.1} parent=35 // pred_fallthru
        _
    $region36: #{conv_block.1} parent=5 // pred_fallthru
      _
  $region6: #{conv_block.1} parent=0 // loop_footer
    %s12 = sadd.s32 1, %s8
  $region7: #{conv_block.1} parent=0 // loop_footer_branch
    %7 = sbr.rel target = $region3
  $region8: #{conv_block.1} parent=0 // loop_exit
    _

</llo_original>
